<compile_context>
chip_gen: v5e
topology: v5e:2x2
jax: 0.10.0
libtpu: 0.0.40
codegen_flags: <defaults>
</compile_context>

<pallas_src>
import jax
import jax.numpy as jnp
from jax import lax
from jax.experimental import pallas as pl
from jax.experimental.pallas import tpu as pltpu


def bilstm_kernel(x_ref, wih_f_ref, b_f_ref, whh_f_ref,
                  wih_b_ref, b_b_ref,
                  wfc_f_ref, wfc_b_ref, bfc_ref,
                  out_ref, h_scr, c_scr, xp_scr):
    # x_ref:   (Tc*Bp, D)   time-major flattened chunk (compute dtype, e.g. bf16)
    # wih_*:   (D, 4Hp)     gate order [i, f, o, g];  b_*: (1, 4Hp) f32 (b_ih + b_hh)
    # whh_f:   (Hp, 4Hp)
    # wfc_*:   (Hp, O)      bfc: (1, O) f32
    # out_ref: (Bp, O) f32
    # h_scr/c_scr: (Bp, Hp) f32 persistent scratch;  xp_scr: (Tc*Bp, 4Hp) f32 scratch
    t_blk = pl.program_id(0)

    @pl.when(t_blk == 0)
    def _():
        h_scr[...] = jnp.zeros_like(h_scr)
        c_scr[...] = jnp.zeros_like(c_scr)

    rows, _ = x_ref.shape
    Bp, Hp = h_scr.shape
    Tc = rows // Bp
    cdt = whh_f_ref.dtype

    # Hoisted input projection for the whole chunk (bias folded in): one wide MXU matmul
    # with f32 accumulation, written to explicit VMEM scratch for dense per-step loads.
    xp_scr[...] = (jnp.dot(x_ref[...], wih_f_ref[...],
                           preferred_element_type=jnp.float32)
                   + b_f_ref[...])

    whh = whh_f_ref[...]

    # NOTE: explicit MXU weight-hold (pltpu.matmul_push_rhs / matmul_acc_lhs / matmul_pop)
    # could pin `whh` in the systolic array across all Tc steps; left to the compiler
    # here for portability across v5e/v6e/v7x.
    def step(t, carry):
        h, c = carry
        r0 = pl.multiple_of(t * Bp, 8)                  # Bp % 8 == 0 -> aligned slab
        gates = xp_scr[pl.ds(r0, Bp), :] + jnp.dot(
            h.astype(cdt), whh, preferred_element_type=jnp.float32)
        # gate layout [i, f, o, g]: one sigmoid over 3Hp lanes, one tanh over Hp lanes.
        sig = jax.nn.sigmoid(gates[:, :3 * Hp])
        i = sig[:, :Hp]
        f = sig[:, Hp:2 * Hp]
        o = sig[:, 2 * Hp:]
        g = jnp.tanh(gates[:, 3 * Hp:])
        c_new = f * c + i * g
        h_new = o * jnp.tanh(c_new)
        return h_new, c_new

    h, c = lax.fori_loop(0, Tc, step, (h_scr[...], c_scr[...]),
                         unroll=min(Tc, 8))
    h_scr[...] = h
    c_scr[...] = c

    @pl.when(t_blk == pl.num_programs(0) - 1)
    def _():
        # Backward direction at the last timestep from a zero state: the recurrent
        # matmul vanishes (W_hh_b unused), c_b = i*g, and the f gate is never needed.
        x_last = x_ref[pl.ds((Tc - 1) * Bp, Bp), :]
        gb = (jnp.dot(x_last, wih_b_ref[...], preferred_element_type=jnp.float32)
              + b_b_ref[...])
        i_b = jax.nn.sigmoid(gb[:, :Hp])
        o_b = jax.nn.sigmoid(gb[:, 2 * Hp:3 * Hp])
        g_b = jnp.tanh(gb[:, 3 * Hp:])
        h_b = o_b * jnp.tanh(i_b * g_b)

        # Split FC (no lane-axis concatenate): two matmuls into the same f32 accumulator.
        out_ref[...] = (jnp.dot(h.astype(cdt), wfc_f_ref[...],
                                preferred_element_type=jnp.float32)
                        + jnp.dot(h_b.astype(cdt), wfc_b_ref[...],
                                  preferred_element_type=jnp.float32)
                        + bfc_ref[...])


def init_params(key, input_dim, hidden_dim, output_dim):
    # Deterministic init mirroring PyTorch parameter shapes (uniform +-1/sqrt(H)).
    k = 1.0 / float(jnp.sqrt(jnp.float32(hidden_dim)))
    keys = jax.random.split(key, 10)

    def u(kk, shape):
        return jax.random.uniform(kk, shape, jnp.float32, -k, k)

    return {
        "w_ih_f": u(keys[0], (4 * hidden_dim, input_dim)),
        "w_hh_f": u(keys[1], (4 * hidden_dim, hidden_dim)),
        "b_ih_f": u(keys[2], (4 * hidden_dim,)),
        "b_hh_f": u(keys[3], (4 * hidden_dim,)),
        "w_ih_b": u(keys[4], (4 * hidden_dim, input_dim)),
        "w_hh_b": u(keys[5], (4 * hidden_dim, hidden_dim)),  # unused (zero bwd state)
        "b_ih_b": u(keys[6], (4 * hidden_dim,)),
        "b_hh_b": u(keys[7], (4 * hidden_dim,)),
        "w_fc":   u(keys[8], (output_dim, 2 * hidden_dim)),
        "b_fc":   u(keys[9], (output_dim,)),
    }


def _reorder_pad_gates(w, H, Hp):
    """PyTorch gate order [i, f, g, o] along axis 0 -> [i, f, o, g], each block padded H->Hp."""
    w2 = w if w.ndim == 2 else w[:, None]
    pad = lambda blk: jnp.pad(blk, ((0, Hp - H), (0, 0)))
    out = jnp.concatenate([pad(w2[:H]), pad(w2[H:2 * H]),
                           pad(w2[3 * H:4 * H]), pad(w2[2 * H:3 * H])], axis=0)
    return out if w.ndim == 2 else out[:, 0]


def _pick_time_chunk(T, Bp, D, Hp, cdt_bytes, budget_bytes):
    """Smallest divisor of T giving >= 512 projection rows within the VMEM budget,
    else the largest divisor that fits."""
    def var_bytes(tc):
        # double-buffered x chunk + f32 xproj scratch
        return 2 * tc * Bp * D * cdt_bytes + tc * Bp * 4 * Hp * 4
    divs = [d for d in range(1, T + 1) if T % d == 0]
    fitting = [d for d in divs if var_bytes(d) <= budget_bytes] or [1]
    for d in fitting:
        if d * Bp >= 512:
            return d
    return fitting[-1]


def bilstm_forward(x, p, *, compute_dtype=jnp.bfloat16, time_chunk=None):
    """x: (B, T, D) float32, batch_first like the PyTorch module. Returns (B, O) float32."""
    B, T, D = x.shape
    H = p["w_hh_f"].shape[1]
    O = p["w_fc"].shape[0]

    Hp = ((H + 127) // 128) * 128          # lane-aligned gate blocks
    Bp = max(8, ((B + 7) // 8) * 8)        # sublane-aligned batch rows
    cdt = compute_dtype
    cdt_bytes = jnp.dtype(cdt).itemsize

    # Per-chip VMEM capacity (fallback if the query is unavailable).
    try:
        vmem_cap = int(pltpu.get_tpu_info().vmem_capacity_bytes)
    except Exception:
        vmem_cap = 64 << 20

    if time_chunk is None or T % time_chunk != 0:
        time_chunk = _pick_time_chunk(T, Bp, D, Hp, cdt_bytes,
                                      budget_bytes=int(0.4 * vmem_cap))
    Tc = time_chunk
    n_t = T // Tc

    # ----- weight prep: gate reorder [i,f,g,o]->[i,f,o,g], H->Hp zero pad, bias fusion,
    # ----- pre-transpose for (x @ W) layout, bf16 cast for the MXU.
    wih_f = _reorder_pad_gates(p["w_ih_f"], H, Hp).T.astype(cdt)                  # (D, 4Hp)
    whh_f = jnp.pad(_reorder_pad_gates(p["w_hh_f"], H, Hp),
                    ((0, 0), (0, Hp - H))).T.astype(cdt)                          # (Hp, 4Hp)
    b_f = _reorder_pad_gates(p["b_ih_f"] + p["b_hh_f"], H, Hp)[None, :]           # (1, 4Hp) f32
    wih_b = _reorder_pad_gates(p["w_ih_b"], H, Hp).T.astype(cdt)                  # (D, 4Hp)
    b_b = _reorder_pad_gates(p["b_ih_b"] + p["b_hh_b"], H, Hp)[None, :]           # (1, 4Hp) f32
    wfc_f = jnp.pad(p["w_fc"][:, :H].T, ((0, Hp - H), (0, 0))).astype(cdt)        # (Hp, O)
    wfc_b = jnp.pad(p["w_fc"][:, H:].T, ((0, Hp - H), (0, 0))).astype(cdt)        # (Hp, O)
    bfc = p["b_fc"][None, :].astype(jnp.float32)                                  # (1, O)

    # ----- input prep: pad batch, go time-major, flatten to (T*Bp, D), cast.
    xp = jnp.pad(x, ((0, Bp - B), (0, 0), (0, 0)))                                # (Bp, T, D)
    x2d = jnp.transpose(xp, (1, 0, 2)).reshape(T * Bp, D).astype(cdt)             # (T*Bp, D)

    const2 = lambda t: (0, 0)
    in_specs = [
        pl.BlockSpec((Tc * Bp, D), lambda t: (t, 0)),   # streamed time chunk
        pl.BlockSpec((D, 4 * Hp), const2),
        pl.BlockSpec((1, 4 * Hp), const2),
        pl.BlockSpec((Hp, 4 * Hp), const2),
        pl.BlockSpec((D, 4 * Hp), const2),
        pl.BlockSpec((1, 4 * Hp), const2),
        pl.BlockSpec((Hp, O), const2),
        pl.BlockSpec((Hp, O), const2),
        pl.BlockSpec((1, O), const2),
    ]
    out_spec = pl.BlockSpec((Bp, O), const2)

    # ----- explicit VMEM budget in BYTES (per-chip cap).
    weight_bytes = ((2 * D * 4 * Hp + Hp * 4 * Hp + 2 * Hp * O) * cdt_bytes
                    + (2 * 4 * Hp + O) * 4)
    x_chunk_bytes = 2 * Tc * Bp * D * cdt_bytes                # double-buffered
    scratch_bytes = (2 * Bp * Hp + Tc * Bp * 4 * Hp) * 4
    out_bytes = 2 * Bp * O * 4
    need = 2 * weight_bytes + x_chunk_bytes + scratch_bytes + out_bytes
    vmem_limit = int(min(max(2 * need + (2 << 20), 8 << 20), int(0.9 * vmem_cap)))

    out = pl.pallas_call(
        bilstm_kernel,
        out_shape=jax.ShapeDtypeStruct((Bp, O), jnp.float32),
        grid_spec=pltpu.PrefetchScalarGridSpec(
            num_scalar_prefetch=0,
            grid=(n_t,),
            in_specs=in_specs,
            out_specs=out_spec,
            scratch_shapes=[pltpu.VMEM((Bp, Hp), jnp.float32),
                            pltpu.VMEM((Bp, Hp), jnp.float32),
                            pltpu.VMEM((Tc * Bp, 4 * Hp), jnp.float32)],
        ),
        compiler_params=pltpu.CompilerParams(
            dimension_semantics=("arbitrary",),
            vmem_limit_bytes=vmem_limit),
    )(x2d, wih_f, b_f, whh_f, wih_b, b_b, wfc_f, wfc_b, bfc)

    return out[:B]


def reference(x, p):
    # Pure-JAX f32 reference matching PyTorch BiLSTM.forward semantics (original gate order).
    B, T, D = x.shape
    H = p["w_hh_f"].shape[1]

    def cell(x_t, h, c, wih, whh, b):
        g = x_t @ wih.T + h @ whh.T + b
        i = jax.nn.sigmoid(g[:, :H])
        f = jax.nn.sigmoid(g[:, H:2 * H])
        gg = jnp.tanh(g[:, 2 * H:3 * H])
        o = jax.nn.sigmoid(g[:, 3 * H:4 * H])
        c = f * c + i * gg
        h = o * jnp.tanh(c)
        return h, c

    h = jnp.zeros((B, H), jnp.float32)
    c = jnp.zeros((B, H), jnp.float32)
    bf = p["b_ih_f"] + p["b_hh_f"]
    for t in range(T):
        h, c = cell(x[:, t, :], h, c, p["w_ih_f"], p["w_hh_f"], bf)
    hb, _ = cell(x[:, -1, :], jnp.zeros((B, H), jnp.float32),
                 jnp.zeros((B, H), jnp.float32),
                 p["w_ih_b"], p["w_hh_b"], p["b_ih_b"] + p["b_hh_b"])
    feat = jnp.concatenate([h, hb], axis=1)
    return feat @ p["w_fc"].T + p["b_fc"]


if __name__ == "__main__":
    B, T, D, H, O = 2, 8, 16, 32, 4
    key = jax.random.PRNGKey(0)
    kx, kp = jax.random.split(key)
    x = jax.random.normal(kx, (B, T, D), jnp.float32)
    params = init_params(kp, D, H, O)

    ref = reference(x, params)

    # Exact-f32 path: tight check against the pure-JAX reference.
    out_f32 = jax.block_until_ready(bilstm_forward(x, params, compute_dtype=jnp.float32))
    assert out_f32.shape == (B, O)
    assert jnp.allclose(out_f32, ref, atol=1e-5, rtol=1e-5), (out_f32, ref)

    # Default bf16-MXU path (f32 accumulation / gate math): loose tolerance.
    out_bf16 = jax.block_until_ready(bilstm_forward(x, params))
    assert out_bf16.shape == (B, O)
    assert jnp.allclose(out_bf16, ref, atol=5e-2, rtol=5e-2), (out_bf16, ref)

    print("KERNEL_OK")
</pallas_src>

<mosaic_0001>
module attributes {stable_mosaic.version = 11 : i64} {
  func.func @bilstm_kernel(%arg0: i32, %arg1: memref<64x16xf32, #tpu.memory_space<vmem>>, %arg2: memref<16x512xf32, #tpu.memory_space<vmem>>, %arg3: memref<1x512xf32, #tpu.memory_space<vmem>>, %arg4: memref<128x512xf32, #tpu.memory_space<vmem>>, %arg5: memref<16x512xf32, #tpu.memory_space<vmem>>, %arg6: memref<1x512xf32, #tpu.memory_space<vmem>>, %arg7: memref<128x4xf32, #tpu.memory_space<vmem>>, %arg8: memref<128x4xf32, #tpu.memory_space<vmem>>, %arg9: memref<1x4xf32, #tpu.memory_space<vmem>>, %arg10: memref<8x4xf32, #tpu.memory_space<vmem>>, %arg11: memref<8x128xf32, #tpu.memory_space<vmem>>, %arg12: memref<8x128xf32, #tpu.memory_space<vmem>>, %arg13: memref<64x512xf32, #tpu.memory_space<vmem>>) attributes {dimension_semantics = [#tpu.dimension_semantics<arbitrary>], iteration_bounds = array<i64: 1>, scalar_prefetch = 0 : i64, scratch_operands = 3 : i64, tpu.core_type = #tpu.core_type<tc>, window_params = [{transform_indices = @transform_0, window_bounds = array<i64: 64, 16>}, {pipeline_mode = #tpu.pipeline_mode<synchronous>, transform_indices = @transform_1, window_bounds = array<i64: 16, 512>}, {pipeline_mode = #tpu.pipeline_mode<synchronous>, transform_indices = @transform_2, window_bounds = array<i64: 1, 512>}, {pipeline_mode = #tpu.pipeline_mode<synchronous>, transform_indices = @transform_3, window_bounds = array<i64: 128, 512>}, {pipeline_mode = #tpu.pipeline_mode<synchronous>, transform_indices = @transform_4, window_bounds = array<i64: 16, 512>}, {pipeline_mode = #tpu.pipeline_mode<synchronous>, transform_indices = @transform_5, window_bounds = array<i64: 1, 512>}, {pipeline_mode = #tpu.pipeline_mode<synchronous>, transform_indices = @transform_6, window_bounds = array<i64: 128, 4>}, {pipeline_mode = #tpu.pipeline_mode<synchronous>, transform_indices = @transform_7, window_bounds = array<i64: 128, 4>}, {pipeline_mode = #tpu.pipeline_mode<synchronous>, transform_indices = @transform_8, window_bounds = array<i64: 1, 4>}, {pipeline_mode = #tpu.pipeline_mode<synchronous>, transform_indices = @transform_9, window_bounds = array<i64: 8, 4>}]} {
    %c0_i32 = arith.constant 0 : i32
    %0 = arith.cmpi eq, %arg0, %c0_i32 : i32
    %1 = arith.extui %0 : i1 to i32
    %c0_i32_0 = arith.constant 0 : i32
    %2 = arith.cmpi ne, %1, %c0_i32_0 : i32
    scf.if %2 {
      %cst_53 = arith.constant 0.000000e+00 : f32
      %194 = vector.broadcast %cst_53 : f32 to vector<8x128xf32>
      %c0_54 = arith.constant 0 : index
      %c0_55 = arith.constant 0 : index
      %195 = vector.load %arg11[%c0_54, %c0_55] : memref<8x128xf32, #tpu.memory_space<vmem>>, vector<8x128xf32>
      tpu.vector_store %arg11[%c0_54, %c0_55], %194 {strides = array<i32>} : memref<8x128xf32, #tpu.memory_space<vmem>>, vector<8x128xf32>,
      %cst_56 = arith.constant 0.000000e+00 : f32
      %196 = vector.broadcast %cst_56 : f32 to vector<8x128xf32>
      %c0_57 = arith.constant 0 : index
      %c0_58 = arith.constant 0 : index
      %197 = vector.load %arg12[%c0_57, %c0_58] : memref<8x128xf32, #tpu.memory_space<vmem>>, vector<8x128xf32>
      tpu.vector_store %arg12[%c0_57, %c0_58], %196 {strides = array<i32>} : memref<8x128xf32, #tpu.memory_space<vmem>>, vector<8x128xf32>,
    } else {
    }
    %c0 = arith.constant 0 : index
    %c0_1 = arith.constant 0 : index
    %3 = vector.load %arg1[%c0, %c0_1] : memref<64x16xf32, #tpu.memory_space<vmem>>, vector<64x16xf32>
    %c0_2 = arith.constant 0 : index
    %c0_3 = arith.constant 0 : index
    %4 = vector.load %arg2[%c0_2, %c0_3] : memref<16x512xf32, #tpu.memory_space<vmem>>, vector<16x512xf32>
    %cst = arith.constant dense<0.000000e+00> : vector<64x512xf32>
    %5 = tpu.matmul %3, %4, %cst {dimension_numbers = #tpu.dot_dimension_numbers<[1], [0], [0], [1], [0, 0, 1, 1], [], []>} : vector<64x16xf32>, vector<16x512xf32>, vector<64x512xf32> -> vector<64x512xf32>
    %c0_4 = arith.constant 0 : index
    %c0_5 = arith.constant 0 : index
    %6 = vector.load %arg3[%c0_4, %c0_5] : memref<1x512xf32, #tpu.memory_space<vmem>>, vector<1x512xf32>
    %7 = vector.broadcast %6 : vector<1x512xf32> to vector<64x512xf32>
    %8 = arith.addf %5, %7 : vector<64x512xf32>
    %c0_6 = arith.constant 0 : index
    %c0_7 = arith.constant 0 : index
    %9 = vector.load %arg13[%c0_6, %c0_7] : memref<64x512xf32, #tpu.memory_space<vmem>>, vector<64x512xf32>
    tpu.vector_store %arg13[%c0_6, %c0_7], %8 {strides = array<i32>} : memref<64x512xf32, #tpu.memory_space<vmem>>, vector<64x512xf32>,
    %c0_8 = arith.constant 0 : index
    %c0_9 = arith.constant 0 : index
    %10 = vector.load %arg4[%c0_8, %c0_9] : memref<128x512xf32, #tpu.memory_space<vmem>>, vector<128x512xf32>
    %c0_10 = arith.constant 0 : index
    %c0_11 = arith.constant 0 : index
    %11 = vector.load %arg11[%c0_10, %c0_11] : memref<8x128xf32, #tpu.memory_space<vmem>>, vector<8x128xf32>
    %c0_12 = arith.constant 0 : index
    %c0_13 = arith.constant 0 : index
    %12 = vector.load %arg12[%c0_12, %c0_13] : memref<8x128xf32, #tpu.memory_space<vmem>>, vector<8x128xf32>
    %c0_i32_14 = arith.constant 0 : i32
    %c8_i32 = arith.constant 8 : i32
    %13 = arith.muli %c0_i32_14, %c8_i32 : i32
    %14 = tpu.assume_multiple %13, 8 : i32
    %15 = arith.index_cast %14 : i32 to index
    %c0_15 = arith.constant 0 : index
    %16 = vector.load %arg13[%15, %c0_15] : memref<64x512xf32, #tpu.memory_space<vmem>>, vector<8x512xf32>
    %cst_16 = arith.constant dense<0.000000e+00> : vector<8x512xf32>
    %17 = tpu.matmul %11, %10, %cst_16 {dimension_numbers = #tpu.dot_dimension_numbers<[1], [0], [0], [1], [0, 0, 1, 1], [], []>} : vector<8x128xf32>, vector<128x512xf32>, vector<8x512xf32> -> vector<8x512xf32>
    %18 = arith.addf %16, %17 : vector<8x512xf32>
    %19 = vector.extract_strided_slice %18 {offsets = [0, 0], sizes = [8, 384], strides = [1, 1]} : vector<8x512xf32> to vector<8x384xf32>
    %20 = arith.negf %19 : vector<8x384xf32>
    %21 = math.exp %20 : vector<8x384xf32>
    %cst_17 = arith.constant 1.000000e+00 : f32
    %22 = vector.broadcast %cst_17 : f32 to vector<8x384xf32>
    %23 = arith.addf %22, %21 : vector<8x384xf32>
    %24 = arith.divf %22, %23 : vector<8x384xf32>
    %25 = vector.extract_strided_slice %24 {offsets = [0, 0], sizes = [8, 128], strides = [1, 1]} : vector<8x384xf32> to vector<8x128xf32>
    %26 = vector.extract_strided_slice %24 {offsets = [0, 128], sizes = [8, 128], strides = [1, 1]} : vector<8x384xf32> to vector<8x128xf32>
    %27 = vector.extract_strided_slice %24 {offsets = [0, 256], sizes = [8, 128], strides = [1, 1]} : vector<8x384xf32> to vector<8x128xf32>
    %28 = vector.extract_strided_slice %18 {offsets = [0, 384], sizes = [8, 128], strides = [1, 1]} : vector<8x512xf32> to vector<8x128xf32>
    %29 = math.tanh %28 : vector<8x128xf32>
    %30 = arith.mulf %26, %12 : vector<8x128xf32>
    %31 = arith.mulf %25, %29 : vector<8x128xf32>
    %32 = arith.addf %30, %31 : vector<8x128xf32>
    %33 = math.tanh %32 : vector<8x128xf32>
    %34 = arith.mulf %27, %33 : vector<8x128xf32>
    %c1_i32 = arith.constant 1 : i32
    %c8_i32_18 = arith.constant 8 : i32
    %35 = arith.muli %c1_i32, %c8_i32_18 : i32
    %36 = tpu.assume_multiple %35, 8 : i32
    %37 = arith.index_cast %36 : i32 to index
    %c0_19 = arith.constant 0 : index
    %38 = vector.load %arg13[%37, %c0_19] : memref<64x512xf32, #tpu.memory_space<vmem>>, vector<8x512xf32>
    %cst_20 = arith.constant dense<0.000000e+00> : vector<8x512xf32>
    %39 = tpu.matmul %34, %10, %cst_20 {dimension_numbers = #tpu.dot_dimension_numbers<[1], [0], [0], [1], [0, 0, 1, 1], [], []>} : vector<8x128xf32>, vector<128x512xf32>, vector<8x512xf32> -> vector<8x512xf32>
    %40 = arith.addf %38, %39 : vector<8x512xf32>
    %41 = vector.extract_strided_slice %40 {offsets = [0, 0], sizes = [8, 384], strides = [1, 1]} : vector<8x512xf32> to vector<8x384xf32>
    %42 = arith.negf %41 : vector<8x384xf32>
    %43 = math.exp %42 : vector<8x384xf32>
    %cst_21 = arith.constant 1.000000e+00 : f32
    %44 = vector.broadcast %cst_21 : f32 to vector<8x384xf32>
    %45 = arith.addf %44, %43 : vector<8x384xf32>
    %46 = arith.divf %44, %45 : vector<8x384xf32>
    %47 = vector.extract_strided_slice %46 {offsets = [0, 0], sizes = [8, 128], strides = [1, 1]} : vector<8x384xf32> to vector<8x128xf32>
    %48 = vector.extract_strided_slice %46 {offsets = [0, 128], sizes = [8, 128], strides = [1, 1]} : vector<8x384xf32> to vector<8x128xf32>
    %49 = vector.extract_strided_slice %46 {offsets = [0, 256], sizes = [8, 128], strides = [1, 1]} : vector<8x384xf32> to vector<8x128xf32>
    %50 = vector.extract_strided_slice %40 {offsets = [0, 384], sizes = [8, 128], strides = [1, 1]} : vector<8x512xf32> to vector<8x128xf32>
    %51 = math.tanh %50 : vector<8x128xf32>
    %52 = arith.mulf %48, %32 : vector<8x128xf32>
    %53 = arith.mulf %47, %51 : vector<8x128xf32>
    %54 = arith.addf %52, %53 : vector<8x128xf32>
    %55 = math.tanh %54 : vector<8x128xf32>
    %56 = arith.mulf %49, %55 : vector<8x128xf32>
    %c2_i32 = arith.constant 2 : i32
    %c8_i32_22 = arith.constant 8 : i32
    %57 = arith.muli %c2_i32, %c8_i32_22 : i32
    %58 = tpu.assume_multiple %57, 8 : i32
    %59 = arith.index_cast %58 : i32 to index
    %c0_23 = arith.constant 0 : index
    %60 = vector.load %arg13[%59, %c0_23] : memref<64x512xf32, #tpu.memory_space<vmem>>, vector<8x512xf32>
    %cst_24 = arith.constant dense<0.000000e+00> : vector<8x512xf32>
    %61 = tpu.matmul %56, %10, %cst_24 {dimension_numbers = #tpu.dot_dimension_numbers<[1], [0], [0], [1], [0, 0, 1, 1], [], []>} : vector<8x128xf32>, vector<128x512xf32>, vector<8x512xf32> -> vector<8x512xf32>
    %62 = arith.addf %60, %61 : vector<8x512xf32>
    %63 = vector.extract_strided_slice %62 {offsets = [0, 0], sizes = [8, 384], strides = [1, 1]} : vector<8x512xf32> to vector<8x384xf32>
    %64 = arith.negf %63 : vector<8x384xf32>
    %65 = math.exp %64 : vector<8x384xf32>
    %cst_25 = arith.constant 1.000000e+00 : f32
    %66 = vector.broadcast %cst_25 : f32 to vector<8x384xf32>
    %67 = arith.addf %66, %65 : vector<8x384xf32>
    %68 = arith.divf %66, %67 : vector<8x384xf32>
    %69 = vector.extract_strided_slice %68 {offsets = [0, 0], sizes = [8, 128], strides = [1, 1]} : vector<8x384xf32> to vector<8x128xf32>
    %70 = vector.extract_strided_slice %68 {offsets = [0, 128], sizes = [8, 128], strides = [1, 1]} : vector<8x384xf32> to vector<8x128xf32>
    %71 = vector.extract_strided_slice %68 {offsets = [0, 256], sizes = [8, 128], strides = [1, 1]} : vector<8x384xf32> to vector<8x128xf32>
    %72 = vector.extract_strided_slice %62 {offsets = [0, 384], sizes = [8, 128], strides = [1, 1]} : vector<8x512xf32> to vector<8x128xf32>
    %73 = math.tanh %72 : vector<8x128xf32>
    %74 = arith.mulf %70, %54 : vector<8x128xf32>
    %75 = arith.mulf %69, %73 : vector<8x128xf32>
    %76 = arith.addf %74, %75 : vector<8x128xf32>
    %77 = math.tanh %76 : vector<8x128xf32>
    %78 = arith.mulf %71, %77 : vector<8x128xf32>
    %c3_i32 = arith.constant 3 : i32
    %c8_i32_26 = arith.constant 8 : i32
    %79 = arith.muli %c3_i32, %c8_i32_26 : i32
    %80 = tpu.assume_multiple %79, 8 : i32
    %81 = arith.index_cast %80 : i32 to index
    %c0_27 = arith.constant 0 : index
    %82 = vector.load %arg13[%81, %c0_27] : memref<64x512xf32, #tpu.memory_space<vmem>>, vector<8x512xf32>
    %cst_28 = arith.constant dense<0.000000e+00> : vector<8x512xf32>
    %83 = tpu.matmul %78, %10, %cst_28 {dimension_numbers = #tpu.dot_dimension_numbers<[1], [0], [0], [1], [0, 0, 1, 1], [], []>} : vector<8x128xf32>, vector<128x512xf32>, vector<8x512xf32> -> vector<8x512xf32>
    %84 = arith.addf %82, %83 : vector<8x512xf32>
    %85 = vector.extract_strided_slice %84 {offsets = [0, 0], sizes = [8, 384], strides = [1, 1]} : vector<8x512xf32> to vector<8x384xf32>
    %86 = arith.negf %85 : vector<8x384xf32>
    %87 = math.exp %86 : vector<8x384xf32>
    %cst_29 = arith.constant 1.000000e+00 : f32
    %88 = vector.broadcast %cst_29 : f32 to vector<8x384xf32>
    %89 = arith.addf %88, %87 : vector<8x384xf32>
    %90 = arith.divf %88, %89 : vector<8x384xf32>
    %91 = vector.extract_strided_slice %90 {offsets = [0, 0], sizes = [8, 128], strides = [1, 1]} : vector<8x384xf32> to vector<8x128xf32>
    %92 = vector.extract_strided_slice %90 {offsets = [0, 128], sizes = [8, 128], strides = [1, 1]} : vector<8x384xf32> to vector<8x128xf32>
    %93 = vector.extract_strided_slice %90 {offsets = [0, 256], sizes = [8, 128], strides = [1, 1]} : vector<8x384xf32> to vector<8x128xf32>
    %94 = vector.extract_strided_slice %84 {offsets = [0, 384], sizes = [8, 128], strides = [1, 1]} : vector<8x512xf32> to vector<8x128xf32>
    %95 = math.tanh %94 : vector<8x128xf32>
    %96 = arith.mulf %92, %76 : vector<8x128xf32>
    %97 = arith.mulf %91, %95 : vector<8x128xf32>
    %98 = arith.addf %96, %97 : vector<8x128xf32>
    %99 = math.tanh %98 : vector<8x128xf32>
    %100 = arith.mulf %93, %99 : vector<8x128xf32>
    %c4_i32 = arith.constant 4 : i32
    %c8_i32_30 = arith.constant 8 : i32
    %101 = arith.muli %c4_i32, %c8_i32_30 : i32
    %102 = tpu.assume_multiple %101, 8 : i32
    %103 = arith.index_cast %102 : i32 to index
    %c0_31 = arith.constant 0 : index
    %104 = vector.load %arg13[%103, %c0_31] : memref<64x512xf32, #tpu.memory_space<vmem>>, vector<8x512xf32>
    %cst_32 = arith.constant dense<0.000000e+00> : vector<8x512xf32>
    %105 = tpu.matmul %100, %10, %cst_32 {dimension_numbers = #tpu.dot_dimension_numbers<[1], [0], [0], [1], [0, 0, 1, 1], [], []>} : vector<8x128xf32>, vector<128x512xf32>, vector<8x512xf32> -> vector<8x512xf32>
    %106 = arith.addf %104, %105 : vector<8x512xf32>
    %107 = vector.extract_strided_slice %106 {offsets = [0, 0], sizes = [8, 384], strides = [1, 1]} : vector<8x512xf32> to vector<8x384xf32>
    %108 = arith.negf %107 : vector<8x384xf32>
    %109 = math.exp %108 : vector<8x384xf32>
    %cst_33 = arith.constant 1.000000e+00 : f32
    %110 = vector.broadcast %cst_33 : f32 to vector<8x384xf32>
    %111 = arith.addf %110, %109 : vector<8x384xf32>
    %112 = arith.divf %110, %111 : vector<8x384xf32>
    %113 = vector.extract_strided_slice %112 {offsets = [0, 0], sizes = [8, 128], strides = [1, 1]} : vector<8x384xf32> to vector<8x128xf32>
    %114 = vector.extract_strided_slice %112 {offsets = [0, 128], sizes = [8, 128], strides = [1, 1]} : vector<8x384xf32> to vector<8x128xf32>
    %115 = vector.extract_strided_slice %112 {offsets = [0, 256], sizes = [8, 128], strides = [1, 1]} : vector<8x384xf32> to vector<8x128xf32>
    %116 = vector.extract_strided_slice %106 {offsets = [0, 384], sizes = [8, 128], strides = [1, 1]} : vector<8x512xf32> to vector<8x128xf32>
    %117 = math.tanh %116 : vector<8x128xf32>
    %118 = arith.mulf %114, %98 : vector<8x128xf32>
    %119 = arith.mulf %113, %117 : vector<8x128xf32>
    %120 = arith.addf %118, %119 : vector<8x128xf32>
    %121 = math.tanh %120 : vector<8x128xf32>
    %122 = arith.mulf %115, %121 : vector<8x128xf32>
    %c5_i32 = arith.constant 5 : i32
    %c8_i32_34 = arith.constant 8 : i32
    %123 = arith.muli %c5_i32, %c8_i32_34 : i32
    %124 = tpu.assume_multiple %123, 8 : i32
    %125 = arith.index_cast %124 : i32 to index
    %c0_35 = arith.constant 0 : index
    %126 = vector.load %arg13[%125, %c0_35] : memref<64x512xf32, #tpu.memory_space<vmem>>, vector<8x512xf32>
    %cst_36 = arith.constant dense<0.000000e+00> : vector<8x512xf32>
    %127 = tpu.matmul %122, %10, %cst_36 {dimension_numbers = #tpu.dot_dimension_numbers<[1], [0], [0], [1], [0, 0, 1, 1], [], []>} : vector<8x128xf32>, vector<128x512xf32>, vector<8x512xf32> -> vector<8x512xf32>
    %128 = arith.addf %126, %127 : vector<8x512xf32>
    %129 = vector.extract_strided_slice %128 {offsets = [0, 0], sizes = [8, 384], strides = [1, 1]} : vector<8x512xf32> to vector<8x384xf32>
    %130 = arith.negf %129 : vector<8x384xf32>
    %131 = math.exp %130 : vector<8x384xf32>
    %cst_37 = arith.constant 1.000000e+00 : f32
    %132 = vector.broadcast %cst_37 : f32 to vector<8x384xf32>
    %133 = arith.addf %132, %131 : vector<8x384xf32>
    %134 = arith.divf %132, %133 : vector<8x384xf32>
    %135 = vector.extract_strided_slice %134 {offsets = [0, 0], sizes = [8, 128], strides = [1, 1]} : vector<8x384xf32> to vector<8x128xf32>
    %136 = vector.extract_strided_slice %134 {offsets = [0, 128], sizes = [8, 128], strides = [1, 1]} : vector<8x384xf32> to vector<8x128xf32>
    %137 = vector.extract_strided_slice %134 {offsets = [0, 256], sizes = [8, 128], strides = [1, 1]} : vector<8x384xf32> to vector<8x128xf32>
    %138 = vector.extract_strided_slice %128 {offsets = [0, 384], sizes = [8, 128], strides = [1, 1]} : vector<8x512xf32> to vector<8x128xf32>
    %139 = math.tanh %138 : vector<8x128xf32>
    %140 = arith.mulf %136, %120 : vector<8x128xf32>
    %141 = arith.mulf %135, %139 : vector<8x128xf32>
    %142 = arith.addf %140, %141 : vector<8x128xf32>
    %143 = math.tanh %142 : vector<8x128xf32>
    %144 = arith.mulf %137, %143 : vector<8x128xf32>
    %c6_i32 = arith.constant 6 : i32
    %c8_i32_38 = arith.constant 8 : i32
    %145 = arith.muli %c6_i32, %c8_i32_38 : i32
    %146 = tpu.assume_multiple %145, 8 : i32
    %147 = arith.index_cast %146 : i32 to index
    %c0_39 = arith.constant 0 : index
    %148 = vector.load %arg13[%147, %c0_39] : memref<64x512xf32, #tpu.memory_space<vmem>>, vector<8x512xf32>
    %cst_40 = arith.constant dense<0.000000e+00> : vector<8x512xf32>
    %149 = tpu.matmul %144, %10, %cst_40 {dimension_numbers = #tpu.dot_dimension_numbers<[1], [0], [0], [1], [0, 0, 1, 1], [], []>} : vector<8x128xf32>, vector<128x512xf32>, vector<8x512xf32> -> vector<8x512xf32>
    %150 = arith.addf %148, %149 : vector<8x512xf32>
    %151 = vector.extract_strided_slice %150 {offsets = [0, 0], sizes = [8, 384], strides = [1, 1]} : vector<8x512xf32> to vector<8x384xf32>
    %152 = arith.negf %151 : vector<8x384xf32>
    %153 = math.exp %152 : vector<8x384xf32>
    %cst_41 = arith.constant 1.000000e+00 : f32
    %154 = vector.broadcast %cst_41 : f32 to vector<8x384xf32>
    %155 = arith.addf %154, %153 : vector<8x384xf32>
    %156 = arith.divf %154, %155 : vector<8x384xf32>
    %157 = vector.extract_strided_slice %156 {offsets = [0, 0], sizes = [8, 128], strides = [1, 1]} : vector<8x384xf32> to vector<8x128xf32>
    %158 = vector.extract_strided_slice %156 {offsets = [0, 128], sizes = [8, 128], strides = [1, 1]} : vector<8x384xf32> to vector<8x128xf32>
    %159 = vector.extract_strided_slice %156 {offsets = [0, 256], sizes = [8, 128], strides = [1, 1]} : vector<8x384xf32> to vector<8x128xf32>
    %160 = vector.extract_strided_slice %150 {offsets = [0, 384], sizes = [8, 128], strides = [1, 1]} : vector<8x512xf32> to vector<8x128xf32>
    %161 = math.tanh %160 : vector<8x128xf32>
    %162 = arith.mulf %158, %142 : vector<8x128xf32>
    %163 = arith.mulf %157, %161 : vector<8x128xf32>
    %164 = arith.addf %162, %163 : vector<8x128xf32>
    %165 = math.tanh %164 : vector<8x128xf32>
    %166 = arith.mulf %159, %165 : vector<8x128xf32>
    %c7_i32 = arith.constant 7 : i32
    %c8_i32_42 = arith.constant 8 : i32
    %167 = arith.muli %c7_i32, %c8_i32_42 : i32
    %168 = tpu.assume_multiple %167, 8 : i32
    %169 = arith.index_cast %168 : i32 to index
    %c0_43 = arith.constant 0 : index
    %170 = vector.load %arg13[%169, %c0_43] : memref<64x512xf32, #tpu.memory_space<vmem>>, vector<8x512xf32>
    %cst_44 = arith.constant dense<0.000000e+00> : vector<8x512xf32>
    %171 = tpu.matmul %166, %10, %cst_44 {dimension_numbers = #tpu.dot_dimension_numbers<[1], [0], [0], [1], [0, 0, 1, 1], [], []>} : vector<8x128xf32>, vector<128x512xf32>, vector<8x512xf32> -> vector<8x512xf32>
    %172 = arith.addf %170, %171 : vector<8x512xf32>
    %173 = vector.extract_strided_slice %172 {offsets = [0, 0], sizes = [8, 384], strides = [1, 1]} : vector<8x512xf32> to vector<8x384xf32>
    %174 = arith.negf %173 : vector<8x384xf32>
    %175 = math.exp %174 : vector<8x384xf32>
    %cst_45 = arith.constant 1.000000e+00 : f32
    %176 = vector.broadcast %cst_45 : f32 to vector<8x384xf32>
    %177 = arith.addf %176, %175 : vector<8x384xf32>
    %178 = arith.divf %176, %177 : vector<8x384xf32>
    %179 = vector.extract_strided_slice %178 {offsets = [0, 0], sizes = [8, 128], strides = [1, 1]} : vector<8x384xf32> to vector<8x128xf32>
    %180 = vector.extract_strided_slice %178 {offsets = [0, 128], sizes = [8, 128], strides = [1, 1]} : vector<8x384xf32> to vector<8x128xf32>
    %181 = vector.extract_strided_slice %178 {offsets = [0, 256], sizes = [8, 128], strides = [1, 1]} : vector<8x384xf32> to vector<8x128xf32>
    %182 = vector.extract_strided_slice %172 {offsets = [0, 384], sizes = [8, 128], strides = [1, 1]} : vector<8x512xf32> to vector<8x128xf32>
    %183 = math.tanh %182 : vector<8x128xf32>
    %184 = arith.mulf %180, %164 : vector<8x128xf32>
    %185 = arith.mulf %179, %183 : vector<8x128xf32>
    %186 = arith.addf %184, %185 : vector<8x128xf32>
    %187 = math.tanh %186 : vector<8x128xf32>
    %188 = arith.mulf %181, %187 : vector<8x128xf32>
    %c8_i32_46 = arith.constant 8 : i32
    %c0_47 = arith.constant 0 : index
    %c0_48 = arith.constant 0 : index
    %189 = vector.load %arg11[%c0_47, %c0_48] : memref<8x128xf32, #tpu.memory_space<vmem>>, vector<8x128xf32>
    tpu.vector_store %arg11[%c0_47, %c0_48], %188 {strides = array<i32>} : memref<8x128xf32, #tpu.memory_space<vmem>>, vector<8x128xf32>,
    %c0_49 = arith.constant 0 : index
    %c0_50 = arith.constant 0 : index
    %190 = vector.load %arg12[%c0_49, %c0_50] : memref<8x128xf32, #tpu.memory_space<vmem>>, vector<8x128xf32>
    tpu.vector_store %arg12[%c0_49, %c0_50], %186 {strides = array<i32>} : memref<8x128xf32, #tpu.memory_space<vmem>>, vector<8x128xf32>,
    %c0_i32_51 = arith.constant 0 : i32
    %191 = arith.cmpi eq, %arg0, %c0_i32_51 : i32
    %192 = arith.extui %191 : i1 to i32
    %c0_i32_52 = arith.constant 0 : i32
    %193 = arith.cmpi ne, %192, %c0_i32_52 : i32
    scf.if %193 {
      %c56 = arith.constant 56 : index
      %c0_53 = arith.constant 0 : index
      %194 = vector.load %arg1[%c56, %c0_53] : memref<64x16xf32, #tpu.memory_space<vmem>>, vector<8x16xf32>
      %c0_54 = arith.constant 0 : index
      %c0_55 = arith.constant 0 : index
      %195 = vector.load %arg5[%c0_54, %c0_55] : memref<16x512xf32, #tpu.memory_space<vmem>>, vector<16x512xf32>
      %cst_56 = arith.constant dense<0.000000e+00> : vector<8x512xf32>
      %196 = tpu.matmul %194, %195, %cst_56 {dimension_numbers = #tpu.dot_dimension_numbers<[1], [0], [0], [1], [0, 0, 1, 1], [], []>} : vector<8x16xf32>, vector<16x512xf32>, vector<8x512xf32> -> vector<8x512xf32>
      %c0_57 = arith.constant 0 : index
      %c0_58 = arith.constant 0 : index
      %197 = vector.load %arg6[%c0_57, %c0_58] : memref<1x512xf32, #tpu.memory_space<vmem>>, vector<1x512xf32>
      %198 = vector.broadcast %197 : vector<1x512xf32> to vector<8x512xf32>
      %199 = arith.addf %196, %198 : vector<8x512xf32>
      %200 = vector.extract_strided_slice %199 {offsets = [0, 0], sizes = [8, 128], strides = [1, 1]} : vector<8x512xf32> to vector<8x128xf32>
      %201 = arith.negf %200 : vector<8x128xf32>
      %202 = math.exp %201 : vector<8x128xf32>
      %cst_59 = arith.constant 1.000000e+00 : f32
      %203 = vector.broadcast %cst_59 : f32 to vector<8x128xf32>
      %204 = arith.addf %203, %202 : vector<8x128xf32>
      %205 = arith.divf %203, %204 : vector<8x128xf32>
      %206 = vector.extract_strided_slice %199 {offsets = [0, 256], sizes = [8, 128], strides = [1, 1]} : vector<8x512xf32> to vector<8x128xf32>
      %207 = arith.negf %206 : vector<8x128xf32>
      %208 = math.exp %207 : vector<8x128xf32>
      %cst_60 = arith.constant 1.000000e+00 : f32
      %209 = vector.broadcast %cst_60 : f32 to vector<8x128xf32>
      %210 = arith.addf %209, %208 : vector<8x128xf32>
      %211 = arith.divf %209, %210 : vector<8x128xf32>
      %212 = vector.extract_strided_slice %199 {offsets = [0, 384], sizes = [8, 128], strides = [1, 1]} : vector<8x512xf32> to vector<8x128xf32>
      %213 = math.tanh %212 : vector<8x128xf32>
      %214 = arith.mulf %205, %213 : vector<8x128xf32>
      %215 = math.tanh %214 : vector<8x128xf32>
      %216 = arith.mulf %211, %215 : vector<8x128xf32>
      %c0_61 = arith.constant 0 : index
      %c0_62 = arith.constant 0 : index
      %217 = vector.load %arg7[%c0_61, %c0_62] : memref<128x4xf32, #tpu.memory_space<vmem>>, vector<128x4xf32>
      %cst_63 = arith.constant dense<0.000000e+00> : vector<8x4xf32>
      %218 = tpu.matmul %188, %217, %cst_63 {dimension_numbers = #tpu.dot_dimension_numbers<[1], [0], [0], [1], [0, 0, 1, 1], [], []>} : vector<8x128xf32>, vector<128x4xf32>, vector<8x4xf32> -> vector<8x4xf32>
      %c0_64 = arith.constant 0 : index
      %c0_65 = arith.constant 0 : index
      %219 = vector.load %arg8[%c0_64, %c0_65] : memref<128x4xf32, #tpu.memory_space<vmem>>, vector<128x4xf32>
      %cst_66 = arith.constant dense<0.000000e+00> : vector<8x4xf32>
      %220 = tpu.matmul %216, %219, %cst_66 {dimension_numbers = #tpu.dot_dimension_numbers<[1], [0], [0], [1], [0, 0, 1, 1], [], []>} : vector<8x128xf32>, vector<128x4xf32>, vector<8x4xf32> -> vector<8x4xf32>
      %221 = arith.addf %218, %220 : vector<8x4xf32>
      %c0_67 = arith.constant 0 : index
      %c0_68 = arith.constant 0 : index
      %222 = vector.load %arg9[%c0_67, %c0_68] : memref<1x4xf32, #tpu.memory_space<vmem>>, vector<1x4xf32>
      %223 = vector.broadcast %222 : vector<1x4xf32> to vector<8x4xf32>
      %224 = arith.addf %221, %223 : vector<8x4xf32>
      %c0_69 = arith.constant 0 : index
      %c0_70 = arith.constant 0 : index
      %225 = vector.load %arg10[%c0_69, %c0_70] : memref<8x4xf32, #tpu.memory_space<vmem>>, vector<8x4xf32>
      tpu.vector_store %arg10[%c0_69, %c0_70], %224 {strides = array<i32>} : memref<8x4xf32, #tpu.memory_space<vmem>>, vector<8x4xf32>,
    } else {
    }
    return
  }
  func.func @transform_0(%arg0: i32) -> (i32, i32) {
    %c0_i32 = arith.constant 0 : i32
    %c0_i32_0 = arith.constant 0 : i32
    return %arg0, %c0_i32 : i32, i32
  }
  func.func @transform_1(%arg0: i32) -> (i32, i32) {
    %c0_i32 = arith.constant 0 : i32
    %c0_i32_0 = arith.constant 0 : i32
    %c0_i32_1 = arith.constant 0 : i32
    return %c0_i32, %c0_i32_0 : i32, i32
  }
  func.func @transform_2(%arg0: i32) -> (i32, i32) {
    %c0_i32 = arith.constant 0 : i32
    %c0_i32_0 = arith.constant 0 : i32
    %c0_i32_1 = arith.constant 0 : i32
    return %c0_i32, %c0_i32_0 : i32, i32
  }
  func.func @transform_3(%arg0: i32) -> (i32, i32) {
    %c0_i32 = arith.constant 0 : i32
    %c0_i32_0 = arith.constant 0 : i32
    %c0_i32_1 = arith.constant 0 : i32
    return %c0_i32, %c0_i32_0 : i32, i32
  }
  func.func @transform_4(%arg0: i32) -> (i32, i32) {
    %c0_i32 = arith.constant 0 : i32
    %c0_i32_0 = arith.constant 0 : i32
    %c0_i32_1 = arith.constant 0 : i32
    return %c0_i32, %c0_i32_0 : i32, i32
  }
  func.func @transform_5(%arg0: i32) -> (i32, i32) {
    %c0_i32 = arith.constant 0 : i32
    %c0_i32_0 = arith.constant 0 : i32
    %c0_i32_1 = arith.constant 0 : i32
    return %c0_i32, %c0_i32_0 : i32, i32
  }
  func.func @transform_6(%arg0: i32) -> (i32, i32) {
    %c0_i32 = arith.constant 0 : i32
    %c0_i32_0 = arith.constant 0 : i32
    %c0_i32_1 = arith.constant 0 : i32
    return %c0_i32, %c0_i32_0 : i32, i32
  }
  func.func @transform_7(%arg0: i32) -> (i32, i32) {
    %c0_i32 = arith.constant 0 : i32
    %c0_i32_0 = arith.constant 0 : i32
    %c0_i32_1 = arith.constant 0 : i32
    return %c0_i32, %c0_i32_0 : i32, i32
  }
  func.func @transform_8(%arg0: i32) -> (i32, i32) {
    %c0_i32 = arith.constant 0 : i32
    %c0_i32_0 = arith.constant 0 : i32
    %c0_i32_1 = arith.constant 0 : i32
    return %c0_i32, %c0_i32_0 : i32, i32
  }
  func.func @transform_9(%arg0: i32) -> (i32, i32) {
    %c0_i32 = arith.constant 0 : i32
    %c0_i32_0 = arith.constant 0 : i32
    %c0_i32_1 = arith.constant 0 : i32
    return %c0_i32, %c0_i32_0 : i32, i32
  }
}

</mosaic_0001>

<llo_original>
// kernel: tpu_custom_call.1
$region0: #{tpu_custom_call.1}
  #allocation0 [shape = 'u32[]', space=smem, size = 0x4, offset = 0x4, fixed_abs, tag = 'smem constant byte address 0x4 - core index']
  #allocation1 [shape = 'u32[72,128]{1,0:T(1,128)}', space=vmem, size = 0x9000, scoped, tag = 'internal scratch']
  #allocation2 [shape = 'f32[8,128]{1,0:T(8,128)}', space=vmem, size = 0x1000, scoped, tag = 'scratch operand']
  #allocation3 [shape = 'f32[8,128]{1,0:T(8,128)}', space=vmem, size = 0x1000, scoped, tag = 'scratch operand']
  #allocation4 [shape = 'f32[64,512]{1,0:T(8,128)}', space=vmem, size = 0x20000, scoped, tag = 'scratch operand']
  %s0 = inlined_call_operand.vmem [shape: f32[64,16], index: 0, kind: input, shape index: {}]
  %s1 = inlined_call_operand.vmem [shape: f32[16,512], index: 1, kind: input, shape index: {}]
  %s2 = inlined_call_operand.vmem [shape: f32[1,512], index: 2, kind: input, shape index: {}]
  %s3 = inlined_call_operand.hbm [shape: f32[128,512], index: 3, kind: input, shape index: {}]
  %s4 = inlined_call_operand.vmem [shape: f32[16,512], index: 4, kind: input, shape index: {}]
  %s5 = inlined_call_operand.vmem [shape: f32[1,512], index: 5, kind: input, shape index: {}]
  %s6 = inlined_call_operand.vmem [shape: f32[128,4], index: 6, kind: input, shape index: {}]
  %s7 = inlined_call_operand.vmem [shape: f32[128,4], index: 7, kind: input, shape index: {}]
  %s8 = inlined_call_operand.vmem [shape: f32[1,4], index: 8, kind: input, shape index: {}]
  %s9 = inlined_call_operand.vmem [shape: f32[8,4], index: 9, kind: output, shape index: {}]
  %s10 = sld [smem:[#allocation0]]
  $region58: #{tpu_custom_call.1} parent=0
    _
  %s12 = ssub.s32 1, %s10
  %s13 = scalar_select 0, %s12, %s10
  $region1: #{tpu_custom_call.1} parent=0
    #allocation5 [shape = 'u8[262144]{0}', space=vmem, size = 0x40000, scoped, tag = 'input window, operand 3, single buffered']
    #allocation6 [shape = 's32[1]{0}', space=sflag, size = 0x4, scoped, tag = 'scoped memory for tpu_custom_call.1']
    %14 = vsyncpa [#allocation6], 0
    // Predicated region
    $region2: #{tpu_custom_call.1} parent=1 // pred_check
      _
    $region3: #{tpu_custom_call.1} parent=1 // pred_check_branch
      %16 = sbr.rel (0) target = $region5
    $region4: #{tpu_custom_call.1} parent=1 // pred_region
      _
    $region5: #{tpu_custom_call.1} parent=1 // pred_fallthru
      _
    // Predicated region
    $region6: #{tpu_custom_call.1} parent=1 // pred_check
      _
    $region7: #{tpu_custom_call.1} parent=1 // pred_check_branch
      %18 = sbr.rel (0) target = $region9
    $region8: #{tpu_custom_call.1} parent=1 // pred_region
      _
    $region9: #{tpu_custom_call.1} parent=1 // pred_fallthru
      _
    // Predicated region
    $region10: #{tpu_custom_call.1} parent=1 // pred_check
      _
    $region11: #{tpu_custom_call.1} parent=1 // pred_check_branch
      %20 = sbr.rel (0) target = $region13
    $region12: #{tpu_custom_call.1} parent=1 // pred_region
      _
    $region13: #{tpu_custom_call.1} parent=1 // pred_fallthru
      _
    // Predicated region
    $region14: #{tpu_custom_call.1} parent=1 // pred_check
      _
    $region15: #{tpu_custom_call.1} parent=1 // pred_check_branch
      %22 = sbr.rel (0) target = $region17
    $region16: #{tpu_custom_call.1} parent=1 // pred_region
      %24 = vsyncadd [#allocation6], 0
      %s25 = sshll.u32 %s3, 4
      %s26 = int_to_ptr.hbm [resolvable:$true] %s25
      %s27 = sshll.u32 [#allocation5], 4
      %s28 = int_to_ptr.vmem [resolvable:$true] %s27
      %33 = dma.hbm_to_vmem [thread:$0]  %s26, 8192, %s28, [#allocation6], 512, 512, 32
    $region17: #{tpu_custom_call.1} parent=1 // pred_fallthru
      _
    // Predicated region
    $region18: #{tpu_custom_call.1} parent=1 // pred_check
      _
    $region19: #{tpu_custom_call.1} parent=1 // pred_check_branch
      %35 = sbr.rel (0) target = $region21
    $region20: #{tpu_custom_call.1} parent=1 // pred_region
      _
    $region21: #{tpu_custom_call.1} parent=1 // pred_fallthru
      _
    // Predicated region
    $region22: #{tpu_custom_call.1} parent=1 // pred_check
      _
    $region23: #{tpu_custom_call.1} parent=1 // pred_check_branch
      %37 = sbr.rel (0) target = $region25
    $region24: #{tpu_custom_call.1} parent=1 // pred_region
      _
    $region25: #{tpu_custom_call.1} parent=1 // pred_fallthru
      _
    // Predicated region
    $region26: #{tpu_custom_call.1} parent=1 // pred_check
      _
    $region27: #{tpu_custom_call.1} parent=1 // pred_check_branch
      %39 = sbr.rel (0) target = $region29
    $region28: #{tpu_custom_call.1} parent=1 // pred_region
      _
    $region29: #{tpu_custom_call.1} parent=1 // pred_fallthru
      _
    // Predicated region
    $region30: #{tpu_custom_call.1} parent=1 // pred_check
      _
    $region31: #{tpu_custom_call.1} parent=1 // pred_check_branch
      %41 = sbr.rel (0) target = $region33
    $region32: #{tpu_custom_call.1} parent=1 // pred_region
      _
    $region33: #{tpu_custom_call.1} parent=1 // pred_fallthru
      _
    // Predicated region
    $region34: #{tpu_custom_call.1} parent=1 // pred_check
      _
    $region35: #{tpu_custom_call.1} parent=1 // pred_check_branch
      %43 = sbr.rel (0) target = $region37
    $region36: #{tpu_custom_call.1} parent=1 // pred_region
      _
    $region37: #{tpu_custom_call.1} parent=1 // pred_fallthru
      _
    // Predicated region
    $region38: #{tpu_custom_call.1} parent=1 // pred_check
      _
    $region39: #{tpu_custom_call.1} parent=1 // pred_check_branch
      %45 = sbr.rel (0) target = $region41
    $region40: #{tpu_custom_call.1} parent=1 // pred_region
      %47 = dma.done [#allocation6], 8192
    $region41: #{tpu_custom_call.1} parent=1 // pred_fallthru
      _
    %p48 = scmp.eq.s32.totalorder 0, 0
    // Predicated region
    $region42: #{tpu_custom_call.1} parent=1 // pred_check
      %p49 = pneg %p48
    $region43: #{tpu_custom_call.1} parent=1 // pred_check_branch
      %51 = sbr.rel (%p49) target = $region45
    $region44: #{tpu_custom_call.1} parent=1 // pred_region
      %52 = vst [vmem:[#allocation2] sm:$0xff] 0.0
      %53 = vst [vmem:[#allocation3] sm:$0xff] 0.0
    $region45: #{tpu_custom_call.1} parent=1 // pred_fallthru
      _
    %v54 = vld [vmem:[%s0] sm:$0xff]
    %v55 = vld [vmem:[%s0 + $0x8] sm:$0xff]
    %v56 = vld [vmem:[%s0 + $0x10] sm:$0xff]
    %v57 = vld [vmem:[%s0 + $0x18] sm:$0xff]
    %v58 = vld [vmem:[%s0 + $0x20] sm:$0xff]
    %v59 = vld [vmem:[%s0 + $0x28] sm:$0xff]
    %v60 = vld [vmem:[%s0 + $0x30] sm:$0xff]
    %v61 = vld [vmem:[%s0 + $0x38] sm:$0xff]
    %v62 = vld [vmem:[%s1] sm:$0xff]
    %v63 = vld [vmem:[%s1 + $0x8] sm:$0xff]
    %v64 = vld [vmem:[%s1 + $0x10] sm:$0xff]
    %v65 = vld [vmem:[%s1 + $0x18] sm:$0xff]
    %v66 = vld [vmem:[%s1 + $0x20] sm:$0xff]
    %v67 = vld [vmem:[%s1 + $0x28] sm:$0xff]
    %v68 = vld [vmem:[%s1 + $0x30] sm:$0xff]
    %v69 = vld [vmem:[%s1 + $0x38] sm:$0xff]
    %v70 = vld [vmem:[%s2] sm:$0xf]
    %v72 = vperm.slane %v70, 0
    %v73 = vperm.slane %v70, 1
    %v74 = vperm.slane %v70, 2
    %v75 = vperm.slane %v70, 3
    %vm80 = vcmask 130048
    %v82 = vsel %vm80, %v54, 0
    %v85 = vsel %vm80, %v55, 0
    %v88 = vsel %vm80, %v56, 0
    %v91 = vsel %vm80, %v57, 0
    %v94 = vsel %vm80, %v58, 0
    %v97 = vsel %vm80, %v59, 0
    %v100 = vsel %vm80, %v60, 0
    %v103 = vsel %vm80, %v61, 0
    %105 = vmatpush.msra.mxu0 0.0
    %106 = vmatpush.msra.mxu0 0.0
    %107 = vmatpush.msra.mxu0 0.0
    %108 = vmatpush.msra.mxu0 0.0
    %109 = vmatpush.msra.mxu0 0.0
    %110 = vmatpush.msra.mxu0 0.0
    %111 = vmatpush.msra.mxu0 0.0
    %112 = vmatpush.msra.mxu0 0.0
    %113 = vmatpush.msra.mxu0 0.0
    %114 = vmatpush.msra.mxu0 0.0
    %115 = vmatpush.msra.mxu0 0.0
    %116 = vmatpush.msra.mxu0 0.0
    %117 = vmatpush.msra.mxu0 0.0
    %118 = vmatpush.msra.mxu0 0.0
    %119 = vmatpush.msra.mxu0 %v66
    %120 = vmatpush.msra.mxu0 %v62
    %121 = vmatmul.f32.gmra.mxu0 %v82
    %v122 = vpop.f32.mrf.mxu0
    %v123 = vadd.f32 %v72, %v122
    %124 = vmatmul.f32.gmra.mxu0 %v85
    %v125 = vpop.f32.mrf.mxu0
    %v126 = vadd.f32 %v72, %v125
    %127 = vmatmul.f32.gmra.mxu0 %v88
    %v128 = vpop.f32.mrf.mxu0
    %v129 = vadd.f32 %v72, %v128
    %130 = vmatmul.f32.gmra.mxu0 %v91
    %v131 = vpop.f32.mrf.mxu0
    %v132 = vadd.f32 %v72, %v131
    %133 = vmatmul.f32.gmra.mxu0 %v94
    %v134 = vpop.f32.mrf.mxu0
    %v135 = vadd.f32 %v72, %v134
    %136 = vmatmul.f32.gmra.mxu0 %v97
    %v137 = vpop.f32.mrf.mxu0
    %v138 = vadd.f32 %v72, %v137
    %139 = vmatmul.f32.gmra.mxu0 %v100
    %v140 = vpop.f32.mrf.mxu0
    %v141 = vadd.f32 %v72, %v140
    %142 = vmatmul.f32.gmra.mxu0 %v103
    %v143 = vpop.f32.mrf.mxu0
    %v144 = vadd.f32 %v72, %v143
    %145 = vdwg.mxu0
    %146 = vmatpush.msra.mxu0 0.0
    %147 = vmatpush.msra.mxu0 0.0
    %148 = vmatpush.msra.mxu0 0.0
    %149 = vmatpush.msra.mxu0 0.0
    %150 = vmatpush.msra.mxu0 0.0
    %151 = vmatpush.msra.mxu0 0.0
    %152 = vmatpush.msra.mxu0 0.0
    %153 = vmatpush.msra.mxu0 0.0
    %154 = vmatpush.msra.mxu0 0.0
    %155 = vmatpush.msra.mxu0 0.0
    %156 = vmatpush.msra.mxu0 0.0
    %157 = vmatpush.msra.mxu0 0.0
    %158 = vmatpush.msra.mxu0 0.0
    %159 = vmatpush.msra.mxu0 0.0
    %160 = vmatpush.msra.mxu0 %v67
    %161 = vmatpush.msra.mxu0 %v63
    %162 = vmatmul.f32.gmra.mxu0 %v82
    %v163 = vpop.f32.mrf.mxu0
    %v164 = vadd.f32 %v73, %v163
    %165 = vmatmul.f32.gmra.mxu0 %v85
    %v166 = vpop.f32.mrf.mxu0
    %v167 = vadd.f32 %v73, %v166
    %168 = vmatmul.f32.gmra.mxu0 %v88
    %v169 = vpop.f32.mrf.mxu0
    %v170 = vadd.f32 %v73, %v169
    %171 = vmatmul.f32.gmra.mxu0 %v91
    %v172 = vpop.f32.mrf.mxu0
    %v173 = vadd.f32 %v73, %v172
    %174 = vmatmul.f32.gmra.mxu0 %v94
    %v175 = vpop.f32.mrf.mxu0
    %v176 = vadd.f32 %v73, %v175
    %177 = vmatmul.f32.gmra.mxu0 %v97
    %v178 = vpop.f32.mrf.mxu0
    %v179 = vadd.f32 %v73, %v178
    %180 = vmatmul.f32.gmra.mxu0 %v100
    %v181 = vpop.f32.mrf.mxu0
    %v182 = vadd.f32 %v73, %v181
    %183 = vmatmul.f32.gmra.mxu0 %v103
    %v184 = vpop.f32.mrf.mxu0
    %v185 = vadd.f32 %v73, %v184
    %186 = vdwg.mxu0
    %187 = vmatpush.msra.mxu0 0.0
    %188 = vmatpush.msra.mxu0 0.0
    %189 = vmatpush.msra.mxu0 0.0
    %190 = vmatpush.msra.mxu0 0.0
    %191 = vmatpush.msra.mxu0 0.0
    %192 = vmatpush.msra.mxu0 0.0
    %193 = vmatpush.msra.mxu0 0.0
    %194 = vmatpush.msra.mxu0 0.0
    %195 = vmatpush.msra.mxu0 0.0
    %196 = vmatpush.msra.mxu0 0.0
    %197 = vmatpush.msra.mxu0 0.0
    %198 = vmatpush.msra.mxu0 0.0
    %199 = vmatpush.msra.mxu0 0.0
    %200 = vmatpush.msra.mxu0 0.0
    %201 = vmatpush.msra.mxu0 %v68
    %202 = vmatpush.msra.mxu0 %v64
    %203 = vmatmul.f32.gmra.mxu0 %v82
    %v204 = vpop.f32.mrf.mxu0
    %v205 = vadd.f32 %v74, %v204
    %206 = vmatmul.f32.gmra.mxu0 %v85
    %v207 = vpop.f32.mrf.mxu0
    %v208 = vadd.f32 %v74, %v207
    %209 = vmatmul.f32.gmra.mxu0 %v88
    %v210 = vpop.f32.mrf.mxu0
    %v211 = vadd.f32 %v74, %v210
    %212 = vmatmul.f32.gmra.mxu0 %v91
    %v213 = vpop.f32.mrf.mxu0
    %v214 = vadd.f32 %v74, %v213
    %215 = vmatmul.f32.gmra.mxu0 %v94
    %v216 = vpop.f32.mrf.mxu0
    %v217 = vadd.f32 %v74, %v216
    %218 = vmatmul.f32.gmra.mxu0 %v97
    %v219 = vpop.f32.mrf.mxu0
    %v220 = vadd.f32 %v74, %v219
    %221 = vmatmul.f32.gmra.mxu0 %v100
    %v222 = vpop.f32.mrf.mxu0
    %v223 = vadd.f32 %v74, %v222
    %224 = vmatmul.f32.gmra.mxu0 %v103
    %v225 = vpop.f32.mrf.mxu0
    %v226 = vadd.f32 %v74, %v225
    %227 = vdwg.mxu0
    %228 = vmatpush.msra.mxu0 0.0
    %229 = vmatpush.msra.mxu0 0.0
    %230 = vmatpush.msra.mxu0 0.0
    %231 = vmatpush.msra.mxu0 0.0
    %232 = vmatpush.msra.mxu0 0.0
    %233 = vmatpush.msra.mxu0 0.0
    %234 = vmatpush.msra.mxu0 0.0
    %235 = vmatpush.msra.mxu0 0.0
    %236 = vmatpush.msra.mxu0 0.0
    %237 = vmatpush.msra.mxu0 0.0
    %238 = vmatpush.msra.mxu0 0.0
    %239 = vmatpush.msra.mxu0 0.0
    %240 = vmatpush.msra.mxu0 0.0
    %241 = vmatpush.msra.mxu0 0.0
    %242 = vmatpush.msra.mxu0 %v69
    %243 = vmatpush.msra.mxu0 %v65
    %244 = vmatmul.f32.gmra.mxu0 %v82
    %v245 = vpop.f32.mrf.mxu0
    %v246 = vadd.f32 %v75, %v245
    %247 = vmatmul.f32.gmra.mxu0 %v85
    %v248 = vpop.f32.mrf.mxu0
    %v249 = vadd.f32 %v75, %v248
    %250 = vmatmul.f32.gmra.mxu0 %v88
    %v251 = vpop.f32.mrf.mxu0
    %v252 = vadd.f32 %v75, %v251
    %253 = vmatmul.f32.gmra.mxu0 %v91
    %v254 = vpop.f32.mrf.mxu0
    %v255 = vadd.f32 %v75, %v254
    %256 = vmatmul.f32.gmra.mxu0 %v94
    %v257 = vpop.f32.mrf.mxu0
    %v258 = vadd.f32 %v75, %v257
    %259 = vmatmul.f32.gmra.mxu0 %v97
    %v260 = vpop.f32.mrf.mxu0
    %v261 = vadd.f32 %v75, %v260
    %262 = vmatmul.f32.gmra.mxu0 %v100
    %v263 = vpop.f32.mrf.mxu0
    %v264 = vadd.f32 %v75, %v263
    %265 = vmatmul.f32.gmra.mxu0 %v103
    %v266 = vpop.f32.mrf.mxu0
    %v267 = vadd.f32 %v75, %v266
    %268 = vdwg.mxu0
    %269 = vst [vmem:[#allocation4] sm:$0xff] %v123
    %270 = vst [vmem:[#allocation4 + $0x8] sm:$0xff] %v164
    %271 = vst [vmem:[#allocation4 + $0x10] sm:$0xff] %v205
    %272 = vst [vmem:[#allocation4 + $0x18] sm:$0xff] %v246
    %273 = vst [vmem:[#allocation4 + $0x20] sm:$0xff] %v126
    %274 = vst [vmem:[#allocation4 + $0x28] sm:$0xff] %v167
    %275 = vst [vmem:[#allocation4 + $0x30] sm:$0xff] %v208
    %276 = vst [vmem:[#allocation4 + $0x38] sm:$0xff] %v249
    %277 = vst [vmem:[#allocation4 + $0x40] sm:$0xff] %v129
    %278 = vst [vmem:[#allocation4 + $0x48] sm:$0xff] %v170
    %279 = vst [vmem:[#allocation4 + $0x50] sm:$0xff] %v211
    %280 = vst [vmem:[#allocation4 + $0x58] sm:$0xff] %v252
    %281 = vst [vmem:[#allocation4 + $0x60] sm:$0xff] %v132
    %282 = vst [vmem:[#allocation4 + $0x68] sm:$0xff] %v173
    %283 = vst [vmem:[#allocation4 + $0x70] sm:$0xff] %v214
    %284 = vst [vmem:[#allocation4 + $0x78] sm:$0xff] %v255
    %285 = vst [vmem:[#allocation4 + $0x80] sm:$0xff] %v135
    %286 = vst [vmem:[#allocation4 + $0x88] sm:$0xff] %v176
    %287 = vst [vmem:[#allocation4 + $0x90] sm:$0xff] %v217
    %288 = vst [vmem:[#allocation4 + $0x98] sm:$0xff] %v258
    %289 = vst [vmem:[#allocation4 + $0xa0] sm:$0xff] %v138
    %290 = vst [vmem:[#allocation4 + $0xa8] sm:$0xff] %v179
    %291 = vst [vmem:[#allocation4 + $0xb0] sm:$0xff] %v220
    %292 = vst [vmem:[#allocation4 + $0xb8] sm:$0xff] %v261
    %293 = vst [vmem:[#allocation4 + $0xc0] sm:$0xff] %v141
    %294 = vst [vmem:[#allocation4 + $0xc8] sm:$0xff] %v182
    %295 = vst [vmem:[#allocation4 + $0xd0] sm:$0xff] %v223
    %296 = vst [vmem:[#allocation4 + $0xd8] sm:$0xff] %v264
    %297 = vst [vmem:[#allocation4 + $0xe0] sm:$0xff] %v144
    %298 = vst [vmem:[#allocation4 + $0xe8] sm:$0xff] %v185
    %299 = vst [vmem:[#allocation4 + $0xf0] sm:$0xff] %v226
    %300 = vst [vmem:[#allocation4 + $0xf8] sm:$0xff] %v267
    %v301 = vld [vmem:[#allocation5] sm:$0xff]
    %v302 = vld [vmem:[#allocation5 + $0x8] sm:$0xff]
    %v303 = vld [vmem:[#allocation5 + $0x10] sm:$0xff]
    %v304 = vld [vmem:[#allocation5 + $0x18] sm:$0xff]
    %v305 = vld [vmem:[#allocation5 + $0x20] sm:$0xff]
    %v306 = vld [vmem:[#allocation5 + $0x28] sm:$0xff]
    %v307 = vld [vmem:[#allocation5 + $0x30] sm:$0xff]
    %v308 = vld [vmem:[#allocation5 + $0x38] sm:$0xff]
    %v309 = vld [vmem:[#allocation5 + $0x40] sm:$0xff]
    %v310 = vld [vmem:[#allocation5 + $0x48] sm:$0xff]
    %v311 = vld [vmem:[#allocation5 + $0x50] sm:$0xff]
    %v312 = vld [vmem:[#allocation5 + $0x58] sm:$0xff]
    %v313 = vld [vmem:[#allocation5 + $0x60] sm:$0xff]
    %v314 = vld [vmem:[#allocation5 + $0x68] sm:$0xff]
    %v315 = vld [vmem:[#allocation5 + $0x70] sm:$0xff]
    %v316 = vld [vmem:[#allocation5 + $0x78] sm:$0xff]
    %v317 = vld [vmem:[#allocation5 + $0x80] sm:$0xff]
    %v318 = vld [vmem:[#allocation5 + $0x88] sm:$0xff]
    %v319 = vld [vmem:[#allocation5 + $0x90] sm:$0xff]
    %v320 = vld [vmem:[#allocation5 + $0x98] sm:$0xff]
    %v321 = vld [vmem:[#allocation5 + $0xa0] sm:$0xff]
    %v322 = vld [vmem:[#allocation5 + $0xa8] sm:$0xff]
    %v323 = vld [vmem:[#allocation5 + $0xb0] sm:$0xff]
    %v324 = vld [vmem:[#allocation5 + $0xb8] sm:$0xff]
    %v325 = vld [vmem:[#allocation5 + $0xc0] sm:$0xff]
    %v326 = vld [vmem:[#allocation5 + $0xc8] sm:$0xff]
    %v327 = vld [vmem:[#allocation5 + $0xd0] sm:$0xff]
    %v328 = vld [vmem:[#allocation5 + $0xd8] sm:$0xff]
    %v329 = vld [vmem:[#allocation5 + $0xe0] sm:$0xff]
    %v330 = vld [vmem:[#allocation5 + $0xe8] sm:$0xff]
    %v331 = vld [vmem:[#allocation5 + $0xf0] sm:$0xff]
    %v332 = vld [vmem:[#allocation5 + $0xf8] sm:$0xff]
    %v333 = vld [vmem:[#allocation5 + $0x100] sm:$0xff]
    %v334 = vld [vmem:[#allocation5 + $0x108] sm:$0xff]
    %v335 = vld [vmem:[#allocation5 + $0x110] sm:$0xff]
    %v336 = vld [vmem:[#allocation5 + $0x118] sm:$0xff]
    %v337 = vld [vmem:[#allocation5 + $0x120] sm:$0xff]
    %v338 = vld [vmem:[#allocation5 + $0x128] sm:$0xff]
    %v339 = vld [vmem:[#allocation5 + $0x130] sm:$0xff]
    %v340 = vld [vmem:[#allocation5 + $0x138] sm:$0xff]
    %v341 = vld [vmem:[#allocation5 + $0x140] sm:$0xff]
    %v342 = vld [vmem:[#allocation5 + $0x148] sm:$0xff]
    %v343 = vld [vmem:[#allocation5 + $0x150] sm:$0xff]
    %v344 = vld [vmem:[#allocation5 + $0x158] sm:$0xff]
    %v345 = vld [vmem:[#allocation5 + $0x160] sm:$0xff]
    %v346 = vld [vmem:[#allocation5 + $0x168] sm:$0xff]
    %v347 = vld [vmem:[#allocation5 + $0x170] sm:$0xff]
    %v348 = vld [vmem:[#allocation5 + $0x178] sm:$0xff]
    %v349 = vld [vmem:[#allocation5 + $0x180] sm:$0xff]
    %v350 = vld [vmem:[#allocation5 + $0x188] sm:$0xff]
    %v351 = vld [vmem:[#allocation5 + $0x190] sm:$0xff]
    %v352 = vld [vmem:[#allocation5 + $0x198] sm:$0xff]
    %v353 = vld [vmem:[#allocation5 + $0x1a0] sm:$0xff]
    %v354 = vld [vmem:[#allocation5 + $0x1a8] sm:$0xff]
    %v355 = vld [vmem:[#allocation5 + $0x1b0] sm:$0xff]
    %v356 = vld [vmem:[#allocation5 + $0x1b8] sm:$0xff]
    %v357 = vld [vmem:[#allocation5 + $0x1c0] sm:$0xff]
    %v358 = vld [vmem:[#allocation5 + $0x1c8] sm:$0xff]
    %v359 = vld [vmem:[#allocation5 + $0x1d0] sm:$0xff]
    %v360 = vld [vmem:[#allocation5 + $0x1d8] sm:$0xff]
    %v361 = vld [vmem:[#allocation5 + $0x1e0] sm:$0xff]
    %v362 = vld [vmem:[#allocation5 + $0x1e8] sm:$0xff]
    %v363 = vld [vmem:[#allocation5 + $0x1f0] sm:$0xff]
    %v364 = vld [vmem:[#allocation5 + $0x1f8] sm:$0xff]
    %v365 = vld [vmem:[#allocation2] sm:$0xff]
    %v366 = vld [vmem:[#allocation3] sm:$0xff]
    %s367 = smul.u32 0, 4
    %s368 = smul.addr %s367, 8
    %s369 = scalar_lea.vmem [#allocation4], %s368
    %v370 = vld [vmem:[%s369] sm:$0xff]
    %v371 = vld [vmem:[%s369 + $0x8] sm:$0xff]
    %v372 = vld [vmem:[%s369 + $0x10] sm:$0xff]
    %v373 = vld [vmem:[%s369 + $0x18] sm:$0xff]
    %374 = vmatpush.msra.mxu0 %v361
    %375 = vmatpush.msra.mxu0 %v357
    %376 = vmatpush.msra.mxu0 %v353
    %377 = vmatpush.msra.mxu0 %v349
    %378 = vmatpush.msra.mxu0 %v345
    %379 = vmatpush.msra.mxu0 %v341
    %380 = vmatpush.msra.mxu0 %v337
    %381 = vmatpush.msra.mxu0 %v333
    %382 = vmatpush.msra.mxu0 %v329
    %383 = vmatpush.msra.mxu0 %v325
    %384 = vmatpush.msra.mxu0 %v321
    %385 = vmatpush.msra.mxu0 %v317
    %386 = vmatpush.msra.mxu0 %v313
    %387 = vmatpush.msra.mxu0 %v309
    %388 = vmatpush.msra.mxu0 %v305
    %389 = vmatpush.msra.mxu0 %v301
    %390 = vmatmul.f32.gmra.mxu0 %v365
    %v391 = vpop.f32.mrf.mxu0
    %v392 = vadd.f32 0.0, %v391
    %393 = vdwg.mxu0
    %394 = vmatpush.msra.mxu0 %v362
    %395 = vmatpush.msra.mxu0 %v358
    %396 = vmatpush.msra.mxu0 %v354
    %397 = vmatpush.msra.mxu0 %v350
    %398 = vmatpush.msra.mxu0 %v346
    %399 = vmatpush.msra.mxu0 %v342
    %400 = vmatpush.msra.mxu0 %v338
    %401 = vmatpush.msra.mxu0 %v334
    %402 = vmatpush.msra.mxu0 %v330
    %403 = vmatpush.msra.mxu0 %v326
    %404 = vmatpush.msra.mxu0 %v322
    %405 = vmatpush.msra.mxu0 %v318
    %406 = vmatpush.msra.mxu0 %v314
    %407 = vmatpush.msra.mxu0 %v310
    %408 = vmatpush.msra.mxu0 %v306
    %409 = vmatpush.msra.mxu0 %v302
    %410 = vmatmul.f32.gmra.mxu0 %v365
    %v411 = vpop.f32.mrf.mxu0
    %v412 = vadd.f32 0.0, %v411
    %413 = vdwg.mxu0
    %414 = vmatpush.msra.mxu0 %v363
    %415 = vmatpush.msra.mxu0 %v359
    %416 = vmatpush.msra.mxu0 %v355
    %417 = vmatpush.msra.mxu0 %v351
    %418 = vmatpush.msra.mxu0 %v347
    %419 = vmatpush.msra.mxu0 %v343
    %420 = vmatpush.msra.mxu0 %v339
    %421 = vmatpush.msra.mxu0 %v335
    %422 = vmatpush.msra.mxu0 %v331
    %423 = vmatpush.msra.mxu0 %v327
    %424 = vmatpush.msra.mxu0 %v323
    %425 = vmatpush.msra.mxu0 %v319
    %426 = vmatpush.msra.mxu0 %v315
    %427 = vmatpush.msra.mxu0 %v311
    %428 = vmatpush.msra.mxu0 %v307
    %429 = vmatpush.msra.mxu0 %v303
    %430 = vmatmul.f32.gmra.mxu0 %v365
    %v431 = vpop.f32.mrf.mxu0
    %v432 = vadd.f32 0.0, %v431
    %433 = vdwg.mxu0
    %434 = vmatpush.msra.mxu0 %v364
    %435 = vmatpush.msra.mxu0 %v360
    %436 = vmatpush.msra.mxu0 %v356
    %437 = vmatpush.msra.mxu0 %v352
    %438 = vmatpush.msra.mxu0 %v348
    %439 = vmatpush.msra.mxu0 %v344
    %440 = vmatpush.msra.mxu0 %v340
    %441 = vmatpush.msra.mxu0 %v336
    %442 = vmatpush.msra.mxu0 %v332
    %443 = vmatpush.msra.mxu0 %v328
    %444 = vmatpush.msra.mxu0 %v324
    %445 = vmatpush.msra.mxu0 %v320
    %446 = vmatpush.msra.mxu0 %v316
    %447 = vmatpush.msra.mxu0 %v312
    %448 = vmatpush.msra.mxu0 %v308
    %449 = vmatpush.msra.mxu0 %v304
    %450 = vmatmul.f32.gmra.mxu0 %v365
    %v451 = vpop.f32.mrf.mxu0
    %v452 = vadd.f32 0.0, %v451
    %453 = vdwg.mxu0
    %v454 = vadd.f32 %v370, %v392
    %v455 = vadd.f32 %v371, %v412
    %v456 = vadd.f32 %v372, %v432
    %v457 = vadd.f32 %v373, %v452
    %v458 = vxor.u32 %v454, 2147483648
    %v459 = vxor.u32 %v455, 2147483648
    %v460 = vxor.u32 %v456, 2147483648
    %v461 = vmul.f32 %v458, 1.442695
    %v462 = vpow.pop %v461
    %v463 = vmul.f32 %v459, 1.442695
    %v464 = vpow.pop %v463
    %v465 = vmul.f32 %v460, 1.442695
    %v466 = vpow.pop %v465
    %v467 = vadd.f32 %v462, 1.0
    %v468 = vadd.f32 %v464, 1.0
    %v469 = vadd.f32 %v466, 1.0
    %v470 = vrcp.pop %v467
    %v471 = vmul.f32 %v467, %v470
    %v472 = vsub.f32 1.0, %v471
    %v473 = vmul.f32 %v470, %v472
    %v474 = vadd.f32 %v470, %v473
    %vm475 = vweird.f32 %v467
    %vm476 = vweird.f32 %v470
    %vm477 = vmor %vm475, %vm476
    %v478 = vsel %vm477, %v470, %v474
    %v479 = vand.u32 2147483647, %v467
    %vm480 = vcmp.eq.f32.partialorder %v479, 8.507059e+37
    %v481 = vand.u32 %v467, 2147483648
    %v482 = vor.u32 1.1754944e-38, %v481
    %v483 = vsel %vm480, %v482, %v478
    %v484 = vmul.f32 1.0, %v483
    %v485 = vrcp.pop %v468
    %v486 = vmul.f32 %v468, %v485
    %v487 = vsub.f32 1.0, %v486
    %v488 = vmul.f32 %v485, %v487
    %v489 = vadd.f32 %v485, %v488
    %vm490 = vweird.f32 %v468
    %vm491 = vweird.f32 %v485
    %vm492 = vmor %vm490, %vm491
    %v493 = vsel %vm492, %v485, %v489
    %v494 = vand.u32 2147483647, %v468
    %vm495 = vcmp.eq.f32.partialorder %v494, 8.507059e+37
    %v496 = vand.u32 %v468, 2147483648
    %v497 = vor.u32 1.1754944e-38, %v496
    %v498 = vsel %vm495, %v497, %v493
    %v499 = vmul.f32 1.0, %v498
    %v500 = vrcp.pop %v469
    %v501 = vmul.f32 %v469, %v500
    %v502 = vsub.f32 1.0, %v501
    %v503 = vmul.f32 %v500, %v502
    %v504 = vadd.f32 %v500, %v503
    %vm505 = vweird.f32 %v469
    %vm506 = vweird.f32 %v500
    %vm507 = vmor %vm505, %vm506
    %v508 = vsel %vm507, %v500, %v504
    %v509 = vand.u32 2147483647, %v469
    %vm510 = vcmp.eq.f32.partialorder %v509, 8.507059e+37
    %v511 = vand.u32 %v469, 2147483648
    %v512 = vor.u32 1.1754944e-38, %v511
    %v513 = vsel %vm510, %v512, %v508
    %v514 = vmul.f32 1.0, %v513
    %v515 = vtanh.pop %v457
    %v516 = vmul.f32 %v499, %v366
    %v517 = vmul.f32 %v484, %v515
    %v518 = vadd.f32 %v516, %v517
    %v519 = vtanh.pop %v518
    %v520 = vmul.f32 %v514, %v519
    %s521 = smul.u32 1, 4
    %s522 = smul.addr %s521, 8
    %s523 = scalar_lea.vmem [#allocation4], %s522
    %v524 = vld [vmem:[%s523] sm:$0xff]
    %v525 = vld [vmem:[%s523 + $0x8] sm:$0xff]
    %v526 = vld [vmem:[%s523 + $0x10] sm:$0xff]
    %v527 = vld [vmem:[%s523 + $0x18] sm:$0xff]
    %528 = vmatpush.msra.mxu0 %v361
    %529 = vmatpush.msra.mxu0 %v357
    %530 = vmatpush.msra.mxu0 %v353
    %531 = vmatpush.msra.mxu0 %v349
    %532 = vmatpush.msra.mxu0 %v345
    %533 = vmatpush.msra.mxu0 %v341
    %534 = vmatpush.msra.mxu0 %v337
    %535 = vmatpush.msra.mxu0 %v333
    %536 = vmatpush.msra.mxu0 %v329
    %537 = vmatpush.msra.mxu0 %v325
    %538 = vmatpush.msra.mxu0 %v321
    %539 = vmatpush.msra.mxu0 %v317
    %540 = vmatpush.msra.mxu0 %v313
    %541 = vmatpush.msra.mxu0 %v309
    %542 = vmatpush.msra.mxu0 %v305
    %543 = vmatpush.msra.mxu0 %v301
    %544 = vmatmul.f32.gmra.mxu0 %v520
    %v545 = vpop.f32.mrf.mxu0
    %v546 = vadd.f32 0.0, %v545
    %547 = vdwg.mxu0
    %548 = vmatpush.msra.mxu0 %v362
    %549 = vmatpush.msra.mxu0 %v358
    %550 = vmatpush.msra.mxu0 %v354
    %551 = vmatpush.msra.mxu0 %v350
    %552 = vmatpush.msra.mxu0 %v346
    %553 = vmatpush.msra.mxu0 %v342
    %554 = vmatpush.msra.mxu0 %v338
    %555 = vmatpush.msra.mxu0 %v334
    %556 = vmatpush.msra.mxu0 %v330
    %557 = vmatpush.msra.mxu0 %v326
    %558 = vmatpush.msra.mxu0 %v322
    %559 = vmatpush.msra.mxu0 %v318
    %560 = vmatpush.msra.mxu0 %v314
    %561 = vmatpush.msra.mxu0 %v310
    %562 = vmatpush.msra.mxu0 %v306
    %563 = vmatpush.msra.mxu0 %v302
    %564 = vmatmul.f32.gmra.mxu0 %v520
    %v565 = vpop.f32.mrf.mxu0
    %v566 = vadd.f32 0.0, %v565
    %567 = vdwg.mxu0
    %568 = vmatpush.msra.mxu0 %v363
    %569 = vmatpush.msra.mxu0 %v359
    %570 = vmatpush.msra.mxu0 %v355
    %571 = vmatpush.msra.mxu0 %v351
    %572 = vmatpush.msra.mxu0 %v347
    %573 = vmatpush.msra.mxu0 %v343
    %574 = vmatpush.msra.mxu0 %v339
    %575 = vmatpush.msra.mxu0 %v335
    %576 = vmatpush.msra.mxu0 %v331
    %577 = vmatpush.msra.mxu0 %v327
    %578 = vmatpush.msra.mxu0 %v323
    %579 = vmatpush.msra.mxu0 %v319
    %580 = vmatpush.msra.mxu0 %v315
    %581 = vmatpush.msra.mxu0 %v311
    %582 = vmatpush.msra.mxu0 %v307
    %583 = vmatpush.msra.mxu0 %v303
    %584 = vmatmul.f32.gmra.mxu0 %v520
    %v585 = vpop.f32.mrf.mxu0
    %v586 = vadd.f32 0.0, %v585
    %587 = vdwg.mxu0
    %588 = vmatpush.msra.mxu0 %v364
    %589 = vmatpush.msra.mxu0 %v360
    %590 = vmatpush.msra.mxu0 %v356
    %591 = vmatpush.msra.mxu0 %v352
    %592 = vmatpush.msra.mxu0 %v348
    %593 = vmatpush.msra.mxu0 %v344
    %594 = vmatpush.msra.mxu0 %v340
    %595 = vmatpush.msra.mxu0 %v336
    %596 = vmatpush.msra.mxu0 %v332
    %597 = vmatpush.msra.mxu0 %v328
    %598 = vmatpush.msra.mxu0 %v324
    %599 = vmatpush.msra.mxu0 %v320
    %600 = vmatpush.msra.mxu0 %v316
    %601 = vmatpush.msra.mxu0 %v312
    %602 = vmatpush.msra.mxu0 %v308
    %603 = vmatpush.msra.mxu0 %v304
    %604 = vmatmul.f32.gmra.mxu0 %v520
    %v605 = vpop.f32.mrf.mxu0
    %v606 = vadd.f32 0.0, %v605
    %607 = vdwg.mxu0
    %v608 = vadd.f32 %v524, %v546
    %v609 = vadd.f32 %v525, %v566
    %v610 = vadd.f32 %v526, %v586
    %v611 = vadd.f32 %v527, %v606
    %v612 = vxor.u32 %v608, 2147483648
    %v613 = vxor.u32 %v609, 2147483648
    %v614 = vxor.u32 %v610, 2147483648
    %v615 = vmul.f32 %v612, 1.442695
    %v616 = vpow.pop %v615
    %v617 = vmul.f32 %v613, 1.442695
    %v618 = vpow.pop %v617
    %v619 = vmul.f32 %v614, 1.442695
    %v620 = vpow.pop %v619
    %v621 = vadd.f32 %v616, 1.0
    %v622 = vadd.f32 %v618, 1.0
    %v623 = vadd.f32 %v620, 1.0
    %v624 = vrcp.pop %v621
    %v625 = vmul.f32 %v621, %v624
    %v626 = vsub.f32 1.0, %v625
    %v627 = vmul.f32 %v624, %v626
    %v628 = vadd.f32 %v624, %v627
    %vm629 = vweird.f32 %v621
    %vm630 = vweird.f32 %v624
    %vm631 = vmor %vm629, %vm630
    %v632 = vsel %vm631, %v624, %v628
    %v633 = vand.u32 2147483647, %v621
    %vm634 = vcmp.eq.f32.partialorder %v633, 8.507059e+37
    %v635 = vand.u32 %v621, 2147483648
    %v636 = vor.u32 1.1754944e-38, %v635
    %v637 = vsel %vm634, %v636, %v632
    %v638 = vmul.f32 1.0, %v637
    %v639 = vrcp.pop %v622
    %v640 = vmul.f32 %v622, %v639
    %v641 = vsub.f32 1.0, %v640
    %v642 = vmul.f32 %v639, %v641
    %v643 = vadd.f32 %v639, %v642
    %vm644 = vweird.f32 %v622
    %vm645 = vweird.f32 %v639
    %vm646 = vmor %vm644, %vm645
    %v647 = vsel %vm646, %v639, %v643
    %v648 = vand.u32 2147483647, %v622
    %vm649 = vcmp.eq.f32.partialorder %v648, 8.507059e+37
    %v650 = vand.u32 %v622, 2147483648
    %v651 = vor.u32 1.1754944e-38, %v650
    %v652 = vsel %vm649, %v651, %v647
    %v653 = vmul.f32 1.0, %v652
    %v654 = vrcp.pop %v623
    %v655 = vmul.f32 %v623, %v654
    %v656 = vsub.f32 1.0, %v655
    %v657 = vmul.f32 %v654, %v656
    %v658 = vadd.f32 %v654, %v657
    %vm659 = vweird.f32 %v623
    %vm660 = vweird.f32 %v654
    %vm661 = vmor %vm659, %vm660
    %v662 = vsel %vm661, %v654, %v658
    %v663 = vand.u32 2147483647, %v623
    %vm664 = vcmp.eq.f32.partialorder %v663, 8.507059e+37
    %v665 = vand.u32 %v623, 2147483648
    %v666 = vor.u32 1.1754944e-38, %v665
    %v667 = vsel %vm664, %v666, %v662
    %v668 = vmul.f32 1.0, %v667
    %v669 = vtanh.pop %v611
    %v670 = vmul.f32 %v653, %v518
    %v671 = vmul.f32 %v638, %v669
    %v672 = vadd.f32 %v670, %v671
    %v673 = vtanh.pop %v672
    %v674 = vmul.f32 %v668, %v673
    %s675 = smul.u32 2, 4
    %s676 = smul.addr %s675, 8
    %s677 = scalar_lea.vmem [#allocation4], %s676
    %v678 = vld [vmem:[%s677] sm:$0xff]
    %v679 = vld [vmem:[%s677 + $0x8] sm:$0xff]
    %v680 = vld [vmem:[%s677 + $0x10] sm:$0xff]
    %v681 = vld [vmem:[%s677 + $0x18] sm:$0xff]
    %682 = vmatpush.msra.mxu0 %v361
    %683 = vmatpush.msra.mxu0 %v357
    %684 = vmatpush.msra.mxu0 %v353
    %685 = vmatpush.msra.mxu0 %v349
    %686 = vmatpush.msra.mxu0 %v345
    %687 = vmatpush.msra.mxu0 %v341
    %688 = vmatpush.msra.mxu0 %v337
    %689 = vmatpush.msra.mxu0 %v333
    %690 = vmatpush.msra.mxu0 %v329
    %691 = vmatpush.msra.mxu0 %v325
    %692 = vmatpush.msra.mxu0 %v321
    %693 = vmatpush.msra.mxu0 %v317
    %694 = vmatpush.msra.mxu0 %v313
    %695 = vmatpush.msra.mxu0 %v309
    %696 = vmatpush.msra.mxu0 %v305
    %697 = vmatpush.msra.mxu0 %v301
    %698 = vmatmul.f32.gmra.mxu0 %v674
    %v699 = vpop.f32.mrf.mxu0
    %v700 = vadd.f32 0.0, %v699
    %701 = vdwg.mxu0
    %702 = vmatpush.msra.mxu0 %v362
    %703 = vmatpush.msra.mxu0 %v358
    %704 = vmatpush.msra.mxu0 %v354
    %705 = vmatpush.msra.mxu0 %v350
    %706 = vmatpush.msra.mxu0 %v346
    %707 = vmatpush.msra.mxu0 %v342
    %708 = vmatpush.msra.mxu0 %v338
    %709 = vmatpush.msra.mxu0 %v334
    %710 = vmatpush.msra.mxu0 %v330
    %711 = vmatpush.msra.mxu0 %v326
    %712 = vmatpush.msra.mxu0 %v322
    %713 = vmatpush.msra.mxu0 %v318
    %714 = vmatpush.msra.mxu0 %v314
    %715 = vmatpush.msra.mxu0 %v310
    %716 = vmatpush.msra.mxu0 %v306
    %717 = vmatpush.msra.mxu0 %v302
    %718 = vmatmul.f32.gmra.mxu0 %v674
    %v719 = vpop.f32.mrf.mxu0
    %v720 = vadd.f32 0.0, %v719
    %721 = vdwg.mxu0
    %722 = vmatpush.msra.mxu0 %v363
    %723 = vmatpush.msra.mxu0 %v359
    %724 = vmatpush.msra.mxu0 %v355
    %725 = vmatpush.msra.mxu0 %v351
    %726 = vmatpush.msra.mxu0 %v347
    %727 = vmatpush.msra.mxu0 %v343
    %728 = vmatpush.msra.mxu0 %v339
    %729 = vmatpush.msra.mxu0 %v335
    %730 = vmatpush.msra.mxu0 %v331
    %731 = vmatpush.msra.mxu0 %v327
    %732 = vmatpush.msra.mxu0 %v323
    %733 = vmatpush.msra.mxu0 %v319
    %734 = vmatpush.msra.mxu0 %v315
    %735 = vmatpush.msra.mxu0 %v311
    %736 = vmatpush.msra.mxu0 %v307
    %737 = vmatpush.msra.mxu0 %v303
    %738 = vmatmul.f32.gmra.mxu0 %v674
    %v739 = vpop.f32.mrf.mxu0
    %v740 = vadd.f32 0.0, %v739
    %741 = vdwg.mxu0
    %742 = vmatpush.msra.mxu0 %v364
    %743 = vmatpush.msra.mxu0 %v360
    %744 = vmatpush.msra.mxu0 %v356
    %745 = vmatpush.msra.mxu0 %v352
    %746 = vmatpush.msra.mxu0 %v348
    %747 = vmatpush.msra.mxu0 %v344
    %748 = vmatpush.msra.mxu0 %v340
    %749 = vmatpush.msra.mxu0 %v336
    %750 = vmatpush.msra.mxu0 %v332
    %751 = vmatpush.msra.mxu0 %v328
    %752 = vmatpush.msra.mxu0 %v324
    %753 = vmatpush.msra.mxu0 %v320
    %754 = vmatpush.msra.mxu0 %v316
    %755 = vmatpush.msra.mxu0 %v312
    %756 = vmatpush.msra.mxu0 %v308
    %757 = vmatpush.msra.mxu0 %v304
    %758 = vmatmul.f32.gmra.mxu0 %v674
    %v759 = vpop.f32.mrf.mxu0
    %v760 = vadd.f32 0.0, %v759
    %761 = vdwg.mxu0
    %v762 = vadd.f32 %v678, %v700
    %v763 = vadd.f32 %v679, %v720
    %v764 = vadd.f32 %v680, %v740
    %v765 = vadd.f32 %v681, %v760
    %v766 = vxor.u32 %v762, 2147483648
    %v767 = vxor.u32 %v763, 2147483648
    %v768 = vxor.u32 %v764, 2147483648
    %v769 = vmul.f32 %v766, 1.442695
    %v770 = vpow.pop %v769
    %v771 = vmul.f32 %v767, 1.442695
    %v772 = vpow.pop %v771
    %v773 = vmul.f32 %v768, 1.442695
    %v774 = vpow.pop %v773
    %v775 = vadd.f32 %v770, 1.0
    %v776 = vadd.f32 %v772, 1.0
    %v777 = vadd.f32 %v774, 1.0
    %v778 = vrcp.pop %v775
    %v779 = vmul.f32 %v775, %v778
    %v780 = vsub.f32 1.0, %v779
    %v781 = vmul.f32 %v778, %v780
    %v782 = vadd.f32 %v778, %v781
    %vm783 = vweird.f32 %v775
    %vm784 = vweird.f32 %v778
    %vm785 = vmor %vm783, %vm784
    %v786 = vsel %vm785, %v778, %v782
    %v787 = vand.u32 2147483647, %v775
    %vm788 = vcmp.eq.f32.partialorder %v787, 8.507059e+37
    %v789 = vand.u32 %v775, 2147483648
    %v790 = vor.u32 1.1754944e-38, %v789
    %v791 = vsel %vm788, %v790, %v786
    %v792 = vmul.f32 1.0, %v791
    %v793 = vrcp.pop %v776
    %v794 = vmul.f32 %v776, %v793
    %v795 = vsub.f32 1.0, %v794
    %v796 = vmul.f32 %v793, %v795
    %v797 = vadd.f32 %v793, %v796
    %vm798 = vweird.f32 %v776
    %vm799 = vweird.f32 %v793
    %vm800 = vmor %vm798, %vm799
    %v801 = vsel %vm800, %v793, %v797
    %v802 = vand.u32 2147483647, %v776
    %vm803 = vcmp.eq.f32.partialorder %v802, 8.507059e+37
    %v804 = vand.u32 %v776, 2147483648
    %v805 = vor.u32 1.1754944e-38, %v804
    %v806 = vsel %vm803, %v805, %v801
    %v807 = vmul.f32 1.0, %v806
    %v808 = vrcp.pop %v777
    %v809 = vmul.f32 %v777, %v808
    %v810 = vsub.f32 1.0, %v809
    %v811 = vmul.f32 %v808, %v810
    %v812 = vadd.f32 %v808, %v811
    %vm813 = vweird.f32 %v777
    %vm814 = vweird.f32 %v808
    %vm815 = vmor %vm813, %vm814
    %v816 = vsel %vm815, %v808, %v812
    %v817 = vand.u32 2147483647, %v777
    %vm818 = vcmp.eq.f32.partialorder %v817, 8.507059e+37
    %v819 = vand.u32 %v777, 2147483648
    %v820 = vor.u32 1.1754944e-38, %v819
    %v821 = vsel %vm818, %v820, %v816
    %v822 = vmul.f32 1.0, %v821
    %v823 = vtanh.pop %v765
    %v824 = vmul.f32 %v807, %v672
    %v825 = vmul.f32 %v792, %v823
    %v826 = vadd.f32 %v824, %v825
    %v827 = vtanh.pop %v826
    %v828 = vmul.f32 %v822, %v827
    %s829 = smul.u32 3, 4
    %s830 = smul.addr %s829, 8
    %s831 = scalar_lea.vmem [#allocation4], %s830
    %v832 = vld [vmem:[%s831] sm:$0xff]
    %v833 = vld [vmem:[%s831 + $0x8] sm:$0xff]
    %v834 = vld [vmem:[%s831 + $0x10] sm:$0xff]
    %v835 = vld [vmem:[%s831 + $0x18] sm:$0xff]
    %836 = vmatpush.msra.mxu0 %v361
    %837 = vmatpush.msra.mxu0 %v357
    %838 = vmatpush.msra.mxu0 %v353
    %839 = vmatpush.msra.mxu0 %v349
    %840 = vmatpush.msra.mxu0 %v345
    %841 = vmatpush.msra.mxu0 %v341
    %842 = vmatpush.msra.mxu0 %v337
    %843 = vmatpush.msra.mxu0 %v333
    %844 = vmatpush.msra.mxu0 %v329
    %845 = vmatpush.msra.mxu0 %v325
    %846 = vmatpush.msra.mxu0 %v321
    %847 = vmatpush.msra.mxu0 %v317
    %848 = vmatpush.msra.mxu0 %v313
    %849 = vmatpush.msra.mxu0 %v309
    %850 = vmatpush.msra.mxu0 %v305
    %851 = vmatpush.msra.mxu0 %v301
    %852 = vmatmul.f32.gmra.mxu0 %v828
    %v853 = vpop.f32.mrf.mxu0
    %v854 = vadd.f32 0.0, %v853
    %855 = vdwg.mxu0
    %856 = vmatpush.msra.mxu0 %v362
    %857 = vmatpush.msra.mxu0 %v358
    %858 = vmatpush.msra.mxu0 %v354
    %859 = vmatpush.msra.mxu0 %v350
    %860 = vmatpush.msra.mxu0 %v346
    %861 = vmatpush.msra.mxu0 %v342
    %862 = vmatpush.msra.mxu0 %v338
    %863 = vmatpush.msra.mxu0 %v334
    %864 = vmatpush.msra.mxu0 %v330
    %865 = vmatpush.msra.mxu0 %v326
    %866 = vmatpush.msra.mxu0 %v322
    %867 = vmatpush.msra.mxu0 %v318
    %868 = vmatpush.msra.mxu0 %v314
    %869 = vmatpush.msra.mxu0 %v310
    %870 = vmatpush.msra.mxu0 %v306
    %871 = vmatpush.msra.mxu0 %v302
    %872 = vmatmul.f32.gmra.mxu0 %v828
    %v873 = vpop.f32.mrf.mxu0
    %v874 = vadd.f32 0.0, %v873
    %875 = vdwg.mxu0
    %876 = vmatpush.msra.mxu0 %v363
    %877 = vmatpush.msra.mxu0 %v359
    %878 = vmatpush.msra.mxu0 %v355
    %879 = vmatpush.msra.mxu0 %v351
    %880 = vmatpush.msra.mxu0 %v347
    %881 = vmatpush.msra.mxu0 %v343
    %882 = vmatpush.msra.mxu0 %v339
    %883 = vmatpush.msra.mxu0 %v335
    %884 = vmatpush.msra.mxu0 %v331
    %885 = vmatpush.msra.mxu0 %v327
    %886 = vmatpush.msra.mxu0 %v323
    %887 = vmatpush.msra.mxu0 %v319
    %888 = vmatpush.msra.mxu0 %v315
    %889 = vmatpush.msra.mxu0 %v311
    %890 = vmatpush.msra.mxu0 %v307
    %891 = vmatpush.msra.mxu0 %v303
    %892 = vmatmul.f32.gmra.mxu0 %v828
    %v893 = vpop.f32.mrf.mxu0
    %v894 = vadd.f32 0.0, %v893
    %895 = vdwg.mxu0
    %896 = vmatpush.msra.mxu0 %v364
    %897 = vmatpush.msra.mxu0 %v360
    %898 = vmatpush.msra.mxu0 %v356
    %899 = vmatpush.msra.mxu0 %v352
    %900 = vmatpush.msra.mxu0 %v348
    %901 = vmatpush.msra.mxu0 %v344
    %902 = vmatpush.msra.mxu0 %v340
    %903 = vmatpush.msra.mxu0 %v336
    %904 = vmatpush.msra.mxu0 %v332
    %905 = vmatpush.msra.mxu0 %v328
    %906 = vmatpush.msra.mxu0 %v324
    %907 = vmatpush.msra.mxu0 %v320
    %908 = vmatpush.msra.mxu0 %v316
    %909 = vmatpush.msra.mxu0 %v312
    %910 = vmatpush.msra.mxu0 %v308
    %911 = vmatpush.msra.mxu0 %v304
    %912 = vmatmul.f32.gmra.mxu0 %v828
    %v913 = vpop.f32.mrf.mxu0
    %v914 = vadd.f32 0.0, %v913
    %915 = vdwg.mxu0
    %v916 = vadd.f32 %v832, %v854
    %v917 = vadd.f32 %v833, %v874
    %v918 = vadd.f32 %v834, %v894
    %v919 = vadd.f32 %v835, %v914
    %v920 = vxor.u32 %v916, 2147483648
    %v921 = vxor.u32 %v917, 2147483648
    %v922 = vxor.u32 %v918, 2147483648
    %v923 = vmul.f32 %v920, 1.442695
    %v924 = vpow.pop %v923
    %v925 = vmul.f32 %v921, 1.442695
    %v926 = vpow.pop %v925
    %v927 = vmul.f32 %v922, 1.442695
    %v928 = vpow.pop %v927
    %v929 = vadd.f32 %v924, 1.0
    %v930 = vadd.f32 %v926, 1.0
    %v931 = vadd.f32 %v928, 1.0
    %v932 = vrcp.pop %v929
    %v933 = vmul.f32 %v929, %v932
    %v934 = vsub.f32 1.0, %v933
    %v935 = vmul.f32 %v932, %v934
    %v936 = vadd.f32 %v932, %v935
    %vm937 = vweird.f32 %v929
    %vm938 = vweird.f32 %v932
    %vm939 = vmor %vm937, %vm938
    %v940 = vsel %vm939, %v932, %v936
    %v941 = vand.u32 2147483647, %v929
    %vm942 = vcmp.eq.f32.partialorder %v941, 8.507059e+37
    %v943 = vand.u32 %v929, 2147483648
    %v944 = vor.u32 1.1754944e-38, %v943
    %v945 = vsel %vm942, %v944, %v940
    %v946 = vmul.f32 1.0, %v945
    %v947 = vrcp.pop %v930
    %v948 = vmul.f32 %v930, %v947
    %v949 = vsub.f32 1.0, %v948
    %v950 = vmul.f32 %v947, %v949
    %v951 = vadd.f32 %v947, %v950
    %vm952 = vweird.f32 %v930
    %vm953 = vweird.f32 %v947
    %vm954 = vmor %vm952, %vm953
    %v955 = vsel %vm954, %v947, %v951
    %v956 = vand.u32 2147483647, %v930
    %vm957 = vcmp.eq.f32.partialorder %v956, 8.507059e+37
    %v958 = vand.u32 %v930, 2147483648
    %v959 = vor.u32 1.1754944e-38, %v958
    %v960 = vsel %vm957, %v959, %v955
    %v961 = vmul.f32 1.0, %v960
    %v962 = vrcp.pop %v931
    %v963 = vmul.f32 %v931, %v962
    %v964 = vsub.f32 1.0, %v963
    %v965 = vmul.f32 %v962, %v964
    %v966 = vadd.f32 %v962, %v965
    %vm967 = vweird.f32 %v931
    %vm968 = vweird.f32 %v962
    %vm969 = vmor %vm967, %vm968
    %v970 = vsel %vm969, %v962, %v966
    %v971 = vand.u32 2147483647, %v931
    %vm972 = vcmp.eq.f32.partialorder %v971, 8.507059e+37
    %v973 = vand.u32 %v931, 2147483648
    %v974 = vor.u32 1.1754944e-38, %v973
    %v975 = vsel %vm972, %v974, %v970
    %v976 = vmul.f32 1.0, %v975
    %v977 = vtanh.pop %v919
    %v978 = vmul.f32 %v961, %v826
    %v979 = vmul.f32 %v946, %v977
    %v980 = vadd.f32 %v978, %v979
    %v981 = vtanh.pop %v980
    %v982 = vmul.f32 %v976, %v981
    %s983 = smul.u32 4, 4
    %s984 = smul.addr %s983, 8
    %s985 = scalar_lea.vmem [#allocation4], %s984
    %v986 = vld [vmem:[%s985] sm:$0xff]
    %v987 = vld [vmem:[%s985 + $0x8] sm:$0xff]
    %v988 = vld [vmem:[%s985 + $0x10] sm:$0xff]
    %v989 = vld [vmem:[%s985 + $0x18] sm:$0xff]
    %990 = vmatpush.msra.mxu0 %v361
    %991 = vmatpush.msra.mxu0 %v357
    %992 = vmatpush.msra.mxu0 %v353
    %993 = vmatpush.msra.mxu0 %v349
    %994 = vmatpush.msra.mxu0 %v345
    %995 = vmatpush.msra.mxu0 %v341
    %996 = vmatpush.msra.mxu0 %v337
    %997 = vmatpush.msra.mxu0 %v333
    %998 = vmatpush.msra.mxu0 %v329
    %999 = vmatpush.msra.mxu0 %v325
    %1000 = vmatpush.msra.mxu0 %v321
    %1001 = vmatpush.msra.mxu0 %v317
    %1002 = vmatpush.msra.mxu0 %v313
    %1003 = vmatpush.msra.mxu0 %v309
    %1004 = vmatpush.msra.mxu0 %v305
    %1005 = vmatpush.msra.mxu0 %v301
    %1006 = vmatmul.f32.gmra.mxu0 %v982
    %v1007 = vpop.f32.mrf.mxu0
    %v1008 = vadd.f32 0.0, %v1007
    %1009 = vdwg.mxu0
    %1010 = vmatpush.msra.mxu0 %v362
    %1011 = vmatpush.msra.mxu0 %v358
    %1012 = vmatpush.msra.mxu0 %v354
    %1013 = vmatpush.msra.mxu0 %v350
    %1014 = vmatpush.msra.mxu0 %v346
    %1015 = vmatpush.msra.mxu0 %v342
    %1016 = vmatpush.msra.mxu0 %v338
    %1017 = vmatpush.msra.mxu0 %v334
    %1018 = vmatpush.msra.mxu0 %v330
    %1019 = vmatpush.msra.mxu0 %v326
    %1020 = vmatpush.msra.mxu0 %v322
    %1021 = vmatpush.msra.mxu0 %v318
    %1022 = vmatpush.msra.mxu0 %v314
    %1023 = vmatpush.msra.mxu0 %v310
    %1024 = vmatpush.msra.mxu0 %v306
    %1025 = vmatpush.msra.mxu0 %v302
    %1026 = vmatmul.f32.gmra.mxu0 %v982
    %v1027 = vpop.f32.mrf.mxu0
    %v1028 = vadd.f32 0.0, %v1027
    %1029 = vdwg.mxu0
    %1030 = vmatpush.msra.mxu0 %v363
    %1031 = vmatpush.msra.mxu0 %v359
    %1032 = vmatpush.msra.mxu0 %v355
    %1033 = vmatpush.msra.mxu0 %v351
    %1034 = vmatpush.msra.mxu0 %v347
    %1035 = vmatpush.msra.mxu0 %v343
    %1036 = vmatpush.msra.mxu0 %v339
    %1037 = vmatpush.msra.mxu0 %v335
    %1038 = vmatpush.msra.mxu0 %v331
    %1039 = vmatpush.msra.mxu0 %v327
    %1040 = vmatpush.msra.mxu0 %v323
    %1041 = vmatpush.msra.mxu0 %v319
    %1042 = vmatpush.msra.mxu0 %v315
    %1043 = vmatpush.msra.mxu0 %v311
    %1044 = vmatpush.msra.mxu0 %v307
    %1045 = vmatpush.msra.mxu0 %v303
    %1046 = vmatmul.f32.gmra.mxu0 %v982
    %v1047 = vpop.f32.mrf.mxu0
    %v1048 = vadd.f32 0.0, %v1047
    %1049 = vdwg.mxu0
    %1050 = vmatpush.msra.mxu0 %v364
    %1051 = vmatpush.msra.mxu0 %v360
    %1052 = vmatpush.msra.mxu0 %v356
    %1053 = vmatpush.msra.mxu0 %v352
    %1054 = vmatpush.msra.mxu0 %v348
    %1055 = vmatpush.msra.mxu0 %v344
    %1056 = vmatpush.msra.mxu0 %v340
    %1057 = vmatpush.msra.mxu0 %v336
    %1058 = vmatpush.msra.mxu0 %v332
    %1059 = vmatpush.msra.mxu0 %v328
    %1060 = vmatpush.msra.mxu0 %v324
    %1061 = vmatpush.msra.mxu0 %v320
    %1062 = vmatpush.msra.mxu0 %v316
    %1063 = vmatpush.msra.mxu0 %v312
    %1064 = vmatpush.msra.mxu0 %v308
    %1065 = vmatpush.msra.mxu0 %v304
    %1066 = vmatmul.f32.gmra.mxu0 %v982
    %v1067 = vpop.f32.mrf.mxu0
    %v1068 = vadd.f32 0.0, %v1067
    %1069 = vdwg.mxu0
    %v1070 = vadd.f32 %v986, %v1008
    %v1071 = vadd.f32 %v987, %v1028
    %v1072 = vadd.f32 %v988, %v1048
    %v1073 = vadd.f32 %v989, %v1068
    %v1074 = vxor.u32 %v1070, 2147483648
    %v1075 = vxor.u32 %v1071, 2147483648
    %v1076 = vxor.u32 %v1072, 2147483648
    %v1077 = vmul.f32 %v1074, 1.442695
    %v1078 = vpow.pop %v1077
    %v1079 = vmul.f32 %v1075, 1.442695
    %v1080 = vpow.pop %v1079
    %v1081 = vmul.f32 %v1076, 1.442695
    %v1082 = vpow.pop %v1081
    %v1083 = vadd.f32 %v1078, 1.0
    %v1084 = vadd.f32 %v1080, 1.0
    %v1085 = vadd.f32 %v1082, 1.0
    %v1086 = vrcp.pop %v1083
    %v1087 = vmul.f32 %v1083, %v1086
    %v1088 = vsub.f32 1.0, %v1087
    %v1089 = vmul.f32 %v1086, %v1088
    %v1090 = vadd.f32 %v1086, %v1089
    %vm1091 = vweird.f32 %v1083
    %vm1092 = vweird.f32 %v1086
    %vm1093 = vmor %vm1091, %vm1092
    %v1094 = vsel %vm1093, %v1086, %v1090
    %v1095 = vand.u32 2147483647, %v1083
    %vm1096 = vcmp.eq.f32.partialorder %v1095, 8.507059e+37
    %v1097 = vand.u32 %v1083, 2147483648
    %v1098 = vor.u32 1.1754944e-38, %v1097
    %v1099 = vsel %vm1096, %v1098, %v1094
    %v1100 = vmul.f32 1.0, %v1099
    %v1101 = vrcp.pop %v1084
    %v1102 = vmul.f32 %v1084, %v1101
    %v1103 = vsub.f32 1.0, %v1102
    %v1104 = vmul.f32 %v1101, %v1103
    %v1105 = vadd.f32 %v1101, %v1104
    %vm1106 = vweird.f32 %v1084
    %vm1107 = vweird.f32 %v1101
    %vm1108 = vmor %vm1106, %vm1107
    %v1109 = vsel %vm1108, %v1101, %v1105
    %v1110 = vand.u32 2147483647, %v1084
    %vm1111 = vcmp.eq.f32.partialorder %v1110, 8.507059e+37
    %v1112 = vand.u32 %v1084, 2147483648
    %v1113 = vor.u32 1.1754944e-38, %v1112
    %v1114 = vsel %vm1111, %v1113, %v1109
    %v1115 = vmul.f32 1.0, %v1114
    %v1116 = vrcp.pop %v1085
    %v1117 = vmul.f32 %v1085, %v1116
    %v1118 = vsub.f32 1.0, %v1117
    %v1119 = vmul.f32 %v1116, %v1118
    %v1120 = vadd.f32 %v1116, %v1119
    %vm1121 = vweird.f32 %v1085
    %vm1122 = vweird.f32 %v1116
    %vm1123 = vmor %vm1121, %vm1122
    %v1124 = vsel %vm1123, %v1116, %v1120
    %v1125 = vand.u32 2147483647, %v1085
    %vm1126 = vcmp.eq.f32.partialorder %v1125, 8.507059e+37
    %v1127 = vand.u32 %v1085, 2147483648
    %v1128 = vor.u32 1.1754944e-38, %v1127
    %v1129 = vsel %vm1126, %v1128, %v1124
    %v1130 = vmul.f32 1.0, %v1129
    %v1131 = vtanh.pop %v1073
    %v1132 = vmul.f32 %v1115, %v980
    %v1133 = vmul.f32 %v1100, %v1131
    %v1134 = vadd.f32 %v1132, %v1133
    %v1135 = vtanh.pop %v1134
    %v1136 = vmul.f32 %v1130, %v1135
    %s1137 = smul.u32 5, 4
    %s1138 = smul.addr %s1137, 8
    %s1139 = scalar_lea.vmem [#allocation4], %s1138
    %v1140 = vld [vmem:[%s1139] sm:$0xff]
    %v1141 = vld [vmem:[%s1139 + $0x8] sm:$0xff]
    %v1142 = vld [vmem:[%s1139 + $0x10] sm:$0xff]
    %v1143 = vld [vmem:[%s1139 + $0x18] sm:$0xff]
    %1144 = vmatpush.msra.mxu0 %v361
    %1145 = vmatpush.msra.mxu0 %v357
    %1146 = vmatpush.msra.mxu0 %v353
    %1147 = vmatpush.msra.mxu0 %v349
    %1148 = vmatpush.msra.mxu0 %v345
    %1149 = vmatpush.msra.mxu0 %v341
    %1150 = vmatpush.msra.mxu0 %v337
    %1151 = vmatpush.msra.mxu0 %v333
    %1152 = vmatpush.msra.mxu0 %v329
    %1153 = vmatpush.msra.mxu0 %v325
    %1154 = vmatpush.msra.mxu0 %v321
    %1155 = vmatpush.msra.mxu0 %v317
    %1156 = vmatpush.msra.mxu0 %v313
    %1157 = vmatpush.msra.mxu0 %v309
    %1158 = vmatpush.msra.mxu0 %v305
    %1159 = vmatpush.msra.mxu0 %v301
    %1160 = vmatmul.f32.gmra.mxu0 %v1136
    %v1161 = vpop.f32.mrf.mxu0
    %v1162 = vadd.f32 0.0, %v1161
    %1163 = vdwg.mxu0
    %1164 = vmatpush.msra.mxu0 %v362
    %1165 = vmatpush.msra.mxu0 %v358
    %1166 = vmatpush.msra.mxu0 %v354
    %1167 = vmatpush.msra.mxu0 %v350
    %1168 = vmatpush.msra.mxu0 %v346
    %1169 = vmatpush.msra.mxu0 %v342
    %1170 = vmatpush.msra.mxu0 %v338
    %1171 = vmatpush.msra.mxu0 %v334
    %1172 = vmatpush.msra.mxu0 %v330
    %1173 = vmatpush.msra.mxu0 %v326
    %1174 = vmatpush.msra.mxu0 %v322
    %1175 = vmatpush.msra.mxu0 %v318
    %1176 = vmatpush.msra.mxu0 %v314
    %1177 = vmatpush.msra.mxu0 %v310
    %1178 = vmatpush.msra.mxu0 %v306
    %1179 = vmatpush.msra.mxu0 %v302
    %1180 = vmatmul.f32.gmra.mxu0 %v1136
    %v1181 = vpop.f32.mrf.mxu0
    %v1182 = vadd.f32 0.0, %v1181
    %1183 = vdwg.mxu0
    %1184 = vmatpush.msra.mxu0 %v363
    %1185 = vmatpush.msra.mxu0 %v359
    %1186 = vmatpush.msra.mxu0 %v355
    %1187 = vmatpush.msra.mxu0 %v351
    %1188 = vmatpush.msra.mxu0 %v347
    %1189 = vmatpush.msra.mxu0 %v343
    %1190 = vmatpush.msra.mxu0 %v339
    %1191 = vmatpush.msra.mxu0 %v335
    %1192 = vmatpush.msra.mxu0 %v331
    %1193 = vmatpush.msra.mxu0 %v327
    %1194 = vmatpush.msra.mxu0 %v323
    %1195 = vmatpush.msra.mxu0 %v319
    %1196 = vmatpush.msra.mxu0 %v315
    %1197 = vmatpush.msra.mxu0 %v311
    %1198 = vmatpush.msra.mxu0 %v307
    %1199 = vmatpush.msra.mxu0 %v303
    %1200 = vmatmul.f32.gmra.mxu0 %v1136
    %v1201 = vpop.f32.mrf.mxu0
    %v1202 = vadd.f32 0.0, %v1201
    %1203 = vdwg.mxu0
    %1204 = vmatpush.msra.mxu0 %v364
    %1205 = vmatpush.msra.mxu0 %v360
    %1206 = vmatpush.msra.mxu0 %v356
    %1207 = vmatpush.msra.mxu0 %v352
    %1208 = vmatpush.msra.mxu0 %v348
    %1209 = vmatpush.msra.mxu0 %v344
    %1210 = vmatpush.msra.mxu0 %v340
    %1211 = vmatpush.msra.mxu0 %v336
    %1212 = vmatpush.msra.mxu0 %v332
    %1213 = vmatpush.msra.mxu0 %v328
    %1214 = vmatpush.msra.mxu0 %v324
    %1215 = vmatpush.msra.mxu0 %v320
    %1216 = vmatpush.msra.mxu0 %v316
    %1217 = vmatpush.msra.mxu0 %v312
    %1218 = vmatpush.msra.mxu0 %v308
    %1219 = vmatpush.msra.mxu0 %v304
    %1220 = vmatmul.f32.gmra.mxu0 %v1136
    %v1221 = vpop.f32.mrf.mxu0
    %v1222 = vadd.f32 0.0, %v1221
    %1223 = vdwg.mxu0
    %v1224 = vadd.f32 %v1140, %v1162
    %v1225 = vadd.f32 %v1141, %v1182
    %v1226 = vadd.f32 %v1142, %v1202
    %v1227 = vadd.f32 %v1143, %v1222
    %v1228 = vxor.u32 %v1224, 2147483648
    %v1229 = vxor.u32 %v1225, 2147483648
    %v1230 = vxor.u32 %v1226, 2147483648
    %v1231 = vmul.f32 %v1228, 1.442695
    %v1232 = vpow.pop %v1231
    %v1233 = vmul.f32 %v1229, 1.442695
    %v1234 = vpow.pop %v1233
    %v1235 = vmul.f32 %v1230, 1.442695
    %v1236 = vpow.pop %v1235
    %v1237 = vadd.f32 %v1232, 1.0
    %v1238 = vadd.f32 %v1234, 1.0
    %v1239 = vadd.f32 %v1236, 1.0
    %v1240 = vrcp.pop %v1237
    %v1241 = vmul.f32 %v1237, %v1240
    %v1242 = vsub.f32 1.0, %v1241
    %v1243 = vmul.f32 %v1240, %v1242
    %v1244 = vadd.f32 %v1240, %v1243
    %vm1245 = vweird.f32 %v1237
    %vm1246 = vweird.f32 %v1240
    %vm1247 = vmor %vm1245, %vm1246
    %v1248 = vsel %vm1247, %v1240, %v1244
    %v1249 = vand.u32 2147483647, %v1237
    %vm1250 = vcmp.eq.f32.partialorder %v1249, 8.507059e+37
    %v1251 = vand.u32 %v1237, 2147483648
    %v1252 = vor.u32 1.1754944e-38, %v1251
    %v1253 = vsel %vm1250, %v1252, %v1248
    %v1254 = vmul.f32 1.0, %v1253
    %v1255 = vrcp.pop %v1238
    %v1256 = vmul.f32 %v1238, %v1255
    %v1257 = vsub.f32 1.0, %v1256
    %v1258 = vmul.f32 %v1255, %v1257
    %v1259 = vadd.f32 %v1255, %v1258
    %vm1260 = vweird.f32 %v1238
    %vm1261 = vweird.f32 %v1255
    %vm1262 = vmor %vm1260, %vm1261
    %v1263 = vsel %vm1262, %v1255, %v1259
    %v1264 = vand.u32 2147483647, %v1238
    %vm1265 = vcmp.eq.f32.partialorder %v1264, 8.507059e+37
    %v1266 = vand.u32 %v1238, 2147483648
    %v1267 = vor.u32 1.1754944e-38, %v1266
    %v1268 = vsel %vm1265, %v1267, %v1263
    %v1269 = vmul.f32 1.0, %v1268
    %v1270 = vrcp.pop %v1239
    %v1271 = vmul.f32 %v1239, %v1270
    %v1272 = vsub.f32 1.0, %v1271
    %v1273 = vmul.f32 %v1270, %v1272
    %v1274 = vadd.f32 %v1270, %v1273
    %vm1275 = vweird.f32 %v1239
    %vm1276 = vweird.f32 %v1270
    %vm1277 = vmor %vm1275, %vm1276
    %v1278 = vsel %vm1277, %v1270, %v1274
    %v1279 = vand.u32 2147483647, %v1239
    %vm1280 = vcmp.eq.f32.partialorder %v1279, 8.507059e+37
    %v1281 = vand.u32 %v1239, 2147483648
    %v1282 = vor.u32 1.1754944e-38, %v1281
    %v1283 = vsel %vm1280, %v1282, %v1278
    %v1284 = vmul.f32 1.0, %v1283
    %v1285 = vtanh.pop %v1227
    %v1286 = vmul.f32 %v1269, %v1134
    %v1287 = vmul.f32 %v1254, %v1285
    %v1288 = vadd.f32 %v1286, %v1287
    %v1289 = vtanh.pop %v1288
    %v1290 = vmul.f32 %v1284, %v1289
    %s1291 = smul.u32 6, 4
    %s1292 = smul.addr %s1291, 8
    %s1293 = scalar_lea.vmem [#allocation4], %s1292
    %v1294 = vld [vmem:[%s1293] sm:$0xff]
    %v1295 = vld [vmem:[%s1293 + $0x8] sm:$0xff]
    %v1296 = vld [vmem:[%s1293 + $0x10] sm:$0xff]
    %v1297 = vld [vmem:[%s1293 + $0x18] sm:$0xff]
    %1298 = vmatpush.msra.mxu0 %v361
    %1299 = vmatpush.msra.mxu0 %v357
    %1300 = vmatpush.msra.mxu0 %v353
    %1301 = vmatpush.msra.mxu0 %v349
    %1302 = vmatpush.msra.mxu0 %v345
    %1303 = vmatpush.msra.mxu0 %v341
    %1304 = vmatpush.msra.mxu0 %v337
    %1305 = vmatpush.msra.mxu0 %v333
    %1306 = vmatpush.msra.mxu0 %v329
    %1307 = vmatpush.msra.mxu0 %v325
    %1308 = vmatpush.msra.mxu0 %v321
    %1309 = vmatpush.msra.mxu0 %v317
    %1310 = vmatpush.msra.mxu0 %v313
    %1311 = vmatpush.msra.mxu0 %v309
    %1312 = vmatpush.msra.mxu0 %v305
    %1313 = vmatpush.msra.mxu0 %v301
    %1314 = vmatmul.f32.gmra.mxu0 %v1290
    %v1315 = vpop.f32.mrf.mxu0
    %v1316 = vadd.f32 0.0, %v1315
    %1317 = vdwg.mxu0
    %1318 = vmatpush.msra.mxu0 %v362
    %1319 = vmatpush.msra.mxu0 %v358
    %1320 = vmatpush.msra.mxu0 %v354
    %1321 = vmatpush.msra.mxu0 %v350
    %1322 = vmatpush.msra.mxu0 %v346
    %1323 = vmatpush.msra.mxu0 %v342
    %1324 = vmatpush.msra.mxu0 %v338
    %1325 = vmatpush.msra.mxu0 %v334
    %1326 = vmatpush.msra.mxu0 %v330
    %1327 = vmatpush.msra.mxu0 %v326
    %1328 = vmatpush.msra.mxu0 %v322
    %1329 = vmatpush.msra.mxu0 %v318
    %1330 = vmatpush.msra.mxu0 %v314
    %1331 = vmatpush.msra.mxu0 %v310
    %1332 = vmatpush.msra.mxu0 %v306
    %1333 = vmatpush.msra.mxu0 %v302
    %1334 = vmatmul.f32.gmra.mxu0 %v1290
    %v1335 = vpop.f32.mrf.mxu0
    %v1336 = vadd.f32 0.0, %v1335
    %1337 = vdwg.mxu0
    %1338 = vmatpush.msra.mxu0 %v363
    %1339 = vmatpush.msra.mxu0 %v359
    %1340 = vmatpush.msra.mxu0 %v355
    %1341 = vmatpush.msra.mxu0 %v351
    %1342 = vmatpush.msra.mxu0 %v347
    %1343 = vmatpush.msra.mxu0 %v343
    %1344 = vmatpush.msra.mxu0 %v339
    %1345 = vmatpush.msra.mxu0 %v335
    %1346 = vmatpush.msra.mxu0 %v331
    %1347 = vmatpush.msra.mxu0 %v327
    %1348 = vmatpush.msra.mxu0 %v323
    %1349 = vmatpush.msra.mxu0 %v319
    %1350 = vmatpush.msra.mxu0 %v315
    %1351 = vmatpush.msra.mxu0 %v311
    %1352 = vmatpush.msra.mxu0 %v307
    %1353 = vmatpush.msra.mxu0 %v303
    %1354 = vmatmul.f32.gmra.mxu0 %v1290
    %v1355 = vpop.f32.mrf.mxu0
    %v1356 = vadd.f32 0.0, %v1355
    %1357 = vdwg.mxu0
    %1358 = vmatpush.msra.mxu0 %v364
    %1359 = vmatpush.msra.mxu0 %v360
    %1360 = vmatpush.msra.mxu0 %v356
    %1361 = vmatpush.msra.mxu0 %v352
    %1362 = vmatpush.msra.mxu0 %v348
    %1363 = vmatpush.msra.mxu0 %v344
    %1364 = vmatpush.msra.mxu0 %v340
    %1365 = vmatpush.msra.mxu0 %v336
    %1366 = vmatpush.msra.mxu0 %v332
    %1367 = vmatpush.msra.mxu0 %v328
    %1368 = vmatpush.msra.mxu0 %v324
    %1369 = vmatpush.msra.mxu0 %v320
    %1370 = vmatpush.msra.mxu0 %v316
    %1371 = vmatpush.msra.mxu0 %v312
    %1372 = vmatpush.msra.mxu0 %v308
    %1373 = vmatpush.msra.mxu0 %v304
    %1374 = vmatmul.f32.gmra.mxu0 %v1290
    %v1375 = vpop.f32.mrf.mxu0
    %v1376 = vadd.f32 0.0, %v1375
    %1377 = vdwg.mxu0
    %v1378 = vadd.f32 %v1294, %v1316
    %v1379 = vadd.f32 %v1295, %v1336
    %v1380 = vadd.f32 %v1296, %v1356
    %v1381 = vadd.f32 %v1297, %v1376
    %v1382 = vxor.u32 %v1378, 2147483648
    %v1383 = vxor.u32 %v1379, 2147483648
    %v1384 = vxor.u32 %v1380, 2147483648
    %v1385 = vmul.f32 %v1382, 1.442695
    %v1386 = vpow.pop %v1385
    %v1387 = vmul.f32 %v1383, 1.442695
    %v1388 = vpow.pop %v1387
    %v1389 = vmul.f32 %v1384, 1.442695
    %v1390 = vpow.pop %v1389
    %v1391 = vadd.f32 %v1386, 1.0
    %v1392 = vadd.f32 %v1388, 1.0
    %v1393 = vadd.f32 %v1390, 1.0
    %v1394 = vrcp.pop %v1391
    %v1395 = vmul.f32 %v1391, %v1394
    %v1396 = vsub.f32 1.0, %v1395
    %v1397 = vmul.f32 %v1394, %v1396
    %v1398 = vadd.f32 %v1394, %v1397
    %vm1399 = vweird.f32 %v1391
    %vm1400 = vweird.f32 %v1394
    %vm1401 = vmor %vm1399, %vm1400
    %v1402 = vsel %vm1401, %v1394, %v1398
    %v1403 = vand.u32 2147483647, %v1391
    %vm1404 = vcmp.eq.f32.partialorder %v1403, 8.507059e+37
    %v1405 = vand.u32 %v1391, 2147483648
    %v1406 = vor.u32 1.1754944e-38, %v1405
    %v1407 = vsel %vm1404, %v1406, %v1402
    %v1408 = vmul.f32 1.0, %v1407
    %v1409 = vrcp.pop %v1392
    %v1410 = vmul.f32 %v1392, %v1409
    %v1411 = vsub.f32 1.0, %v1410
    %v1412 = vmul.f32 %v1409, %v1411
    %v1413 = vadd.f32 %v1409, %v1412
    %vm1414 = vweird.f32 %v1392
    %vm1415 = vweird.f32 %v1409
    %vm1416 = vmor %vm1414, %vm1415
    %v1417 = vsel %vm1416, %v1409, %v1413
    %v1418 = vand.u32 2147483647, %v1392
    %vm1419 = vcmp.eq.f32.partialorder %v1418, 8.507059e+37
    %v1420 = vand.u32 %v1392, 2147483648
    %v1421 = vor.u32 1.1754944e-38, %v1420
    %v1422 = vsel %vm1419, %v1421, %v1417
    %v1423 = vmul.f32 1.0, %v1422
    %v1424 = vrcp.pop %v1393
    %v1425 = vmul.f32 %v1393, %v1424
    %v1426 = vsub.f32 1.0, %v1425
    %v1427 = vmul.f32 %v1424, %v1426
    %v1428 = vadd.f32 %v1424, %v1427
    %vm1429 = vweird.f32 %v1393
    %vm1430 = vweird.f32 %v1424
    %vm1431 = vmor %vm1429, %vm1430
    %v1432 = vsel %vm1431, %v1424, %v1428
    %v1433 = vand.u32 2147483647, %v1393
    %vm1434 = vcmp.eq.f32.partialorder %v1433, 8.507059e+37
    %v1435 = vand.u32 %v1393, 2147483648
    %v1436 = vor.u32 1.1754944e-38, %v1435
    %v1437 = vsel %vm1434, %v1436, %v1432
    %v1438 = vmul.f32 1.0, %v1437
    %v1439 = vtanh.pop %v1381
    %v1440 = vmul.f32 %v1423, %v1288
    %v1441 = vmul.f32 %v1408, %v1439
    %v1442 = vadd.f32 %v1440, %v1441
    %v1443 = vtanh.pop %v1442
    %v1444 = vmul.f32 %v1438, %v1443
    %s1445 = smul.u32 7, 4
    %s1446 = smul.addr %s1445, 8
    %s1447 = scalar_lea.vmem [#allocation4], %s1446
    %v1448 = vld [vmem:[%s1447] sm:$0xff]
    %v1449 = vld [vmem:[%s1447 + $0x8] sm:$0xff]
    %v1450 = vld [vmem:[%s1447 + $0x10] sm:$0xff]
    %v1451 = vld [vmem:[%s1447 + $0x18] sm:$0xff]
    %1452 = vmatpush.msra.mxu0 %v361
    %1453 = vmatpush.msra.mxu0 %v357
    %1454 = vmatpush.msra.mxu0 %v353
    %1455 = vmatpush.msra.mxu0 %v349
    %1456 = vmatpush.msra.mxu0 %v345
    %1457 = vmatpush.msra.mxu0 %v341
    %1458 = vmatpush.msra.mxu0 %v337
    %1459 = vmatpush.msra.mxu0 %v333
    %1460 = vmatpush.msra.mxu0 %v329
    %1461 = vmatpush.msra.mxu0 %v325
    %1462 = vmatpush.msra.mxu0 %v321
    %1463 = vmatpush.msra.mxu0 %v317
    %1464 = vmatpush.msra.mxu0 %v313
    %1465 = vmatpush.msra.mxu0 %v309
    %1466 = vmatpush.msra.mxu0 %v305
    %1467 = vmatpush.msra.mxu0 %v301
    %1468 = vmatmul.f32.gmra.mxu0 %v1444
    %v1469 = vpop.f32.mrf.mxu0
    %v1470 = vadd.f32 0.0, %v1469
    %1471 = vdwg.mxu0
    %1472 = vmatpush.msra.mxu0 %v362
    %1473 = vmatpush.msra.mxu0 %v358
    %1474 = vmatpush.msra.mxu0 %v354
    %1475 = vmatpush.msra.mxu0 %v350
    %1476 = vmatpush.msra.mxu0 %v346
    %1477 = vmatpush.msra.mxu0 %v342
    %1478 = vmatpush.msra.mxu0 %v338
    %1479 = vmatpush.msra.mxu0 %v334
    %1480 = vmatpush.msra.mxu0 %v330
    %1481 = vmatpush.msra.mxu0 %v326
    %1482 = vmatpush.msra.mxu0 %v322
    %1483 = vmatpush.msra.mxu0 %v318
    %1484 = vmatpush.msra.mxu0 %v314
    %1485 = vmatpush.msra.mxu0 %v310
    %1486 = vmatpush.msra.mxu0 %v306
    %1487 = vmatpush.msra.mxu0 %v302
    %1488 = vmatmul.f32.gmra.mxu0 %v1444
    %v1489 = vpop.f32.mrf.mxu0
    %v1490 = vadd.f32 0.0, %v1489
    %1491 = vdwg.mxu0
    %1492 = vmatpush.msra.mxu0 %v363
    %1493 = vmatpush.msra.mxu0 %v359
    %1494 = vmatpush.msra.mxu0 %v355
    %1495 = vmatpush.msra.mxu0 %v351
    %1496 = vmatpush.msra.mxu0 %v347
    %1497 = vmatpush.msra.mxu0 %v343
    %1498 = vmatpush.msra.mxu0 %v339
    %1499 = vmatpush.msra.mxu0 %v335
    %1500 = vmatpush.msra.mxu0 %v331
    %1501 = vmatpush.msra.mxu0 %v327
    %1502 = vmatpush.msra.mxu0 %v323
    %1503 = vmatpush.msra.mxu0 %v319
    %1504 = vmatpush.msra.mxu0 %v315
    %1505 = vmatpush.msra.mxu0 %v311
    %1506 = vmatpush.msra.mxu0 %v307
    %1507 = vmatpush.msra.mxu0 %v303
    %1508 = vmatmul.f32.gmra.mxu0 %v1444
    %v1509 = vpop.f32.mrf.mxu0
    %v1510 = vadd.f32 0.0, %v1509
    %1511 = vdwg.mxu0
    %1512 = vmatpush.msra.mxu0 %v364
    %1513 = vmatpush.msra.mxu0 %v360
    %1514 = vmatpush.msra.mxu0 %v356
    %1515 = vmatpush.msra.mxu0 %v352
    %1516 = vmatpush.msra.mxu0 %v348
    %1517 = vmatpush.msra.mxu0 %v344
    %1518 = vmatpush.msra.mxu0 %v340
    %1519 = vmatpush.msra.mxu0 %v336
    %1520 = vmatpush.msra.mxu0 %v332
    %1521 = vmatpush.msra.mxu0 %v328
    %1522 = vmatpush.msra.mxu0 %v324
    %1523 = vmatpush.msra.mxu0 %v320
    %1524 = vmatpush.msra.mxu0 %v316
    %1525 = vmatpush.msra.mxu0 %v312
    %1526 = vmatpush.msra.mxu0 %v308
    %1527 = vmatpush.msra.mxu0 %v304
    %1528 = vmatmul.f32.gmra.mxu0 %v1444
    %v1529 = vpop.f32.mrf.mxu0
    %v1530 = vadd.f32 0.0, %v1529
    %1531 = vdwg.mxu0
    %v1532 = vadd.f32 %v1448, %v1470
    %v1533 = vadd.f32 %v1449, %v1490
    %v1534 = vadd.f32 %v1450, %v1510
    %v1535 = vadd.f32 %v1451, %v1530
    %v1536 = vxor.u32 %v1532, 2147483648
    %v1537 = vxor.u32 %v1533, 2147483648
    %v1538 = vxor.u32 %v1534, 2147483648
    %v1539 = vmul.f32 %v1536, 1.442695
    %v1540 = vpow.pop %v1539
    %v1541 = vmul.f32 %v1537, 1.442695
    %v1542 = vpow.pop %v1541
    %v1543 = vmul.f32 %v1538, 1.442695
    %v1544 = vpow.pop %v1543
    %v1545 = vadd.f32 %v1540, 1.0
    %v1546 = vadd.f32 %v1542, 1.0
    %v1547 = vadd.f32 %v1544, 1.0
    %v1548 = vrcp.pop %v1545
    %v1549 = vmul.f32 %v1545, %v1548
    %v1550 = vsub.f32 1.0, %v1549
    %v1551 = vmul.f32 %v1548, %v1550
    %v1552 = vadd.f32 %v1548, %v1551
    %vm1553 = vweird.f32 %v1545
    %vm1554 = vweird.f32 %v1548
    %vm1555 = vmor %vm1553, %vm1554
    %v1556 = vsel %vm1555, %v1548, %v1552
    %v1557 = vand.u32 2147483647, %v1545
    %vm1558 = vcmp.eq.f32.partialorder %v1557, 8.507059e+37
    %v1559 = vand.u32 %v1545, 2147483648
    %v1560 = vor.u32 1.1754944e-38, %v1559
    %v1561 = vsel %vm1558, %v1560, %v1556
    %v1562 = vmul.f32 1.0, %v1561
    %v1563 = vrcp.pop %v1546
    %v1564 = vmul.f32 %v1546, %v1563
    %v1565 = vsub.f32 1.0, %v1564
    %v1566 = vmul.f32 %v1563, %v1565
    %v1567 = vadd.f32 %v1563, %v1566
    %vm1568 = vweird.f32 %v1546
    %vm1569 = vweird.f32 %v1563
    %vm1570 = vmor %vm1568, %vm1569
    %v1571 = vsel %vm1570, %v1563, %v1567
    %v1572 = vand.u32 2147483647, %v1546
    %vm1573 = vcmp.eq.f32.partialorder %v1572, 8.507059e+37
    %v1574 = vand.u32 %v1546, 2147483648
    %v1575 = vor.u32 1.1754944e-38, %v1574
    %v1576 = vsel %vm1573, %v1575, %v1571
    %v1577 = vmul.f32 1.0, %v1576
    %v1578 = vrcp.pop %v1547
    %v1579 = vmul.f32 %v1547, %v1578
    %v1580 = vsub.f32 1.0, %v1579
    %v1581 = vmul.f32 %v1578, %v1580
    %v1582 = vadd.f32 %v1578, %v1581
    %vm1583 = vweird.f32 %v1547
    %vm1584 = vweird.f32 %v1578
    %vm1585 = vmor %vm1583, %vm1584
    %v1586 = vsel %vm1585, %v1578, %v1582
    %v1587 = vand.u32 2147483647, %v1547
    %vm1588 = vcmp.eq.f32.partialorder %v1587, 8.507059e+37
    %v1589 = vand.u32 %v1547, 2147483648
    %v1590 = vor.u32 1.1754944e-38, %v1589
    %v1591 = vsel %vm1588, %v1590, %v1586
    %v1592 = vmul.f32 1.0, %v1591
    %v1593 = vtanh.pop %v1535
    %v1594 = vmul.f32 %v1577, %v1442
    %v1595 = vmul.f32 %v1562, %v1593
    %v1596 = vadd.f32 %v1594, %v1595
    %v1597 = vtanh.pop %v1596
    %v1598 = vmul.f32 %v1592, %v1597
    %1599 = vst [vmem:[#allocation2] sm:$0xff] %v1598
    %1600 = vst [vmem:[#allocation3] sm:$0xff] %v1596
    // Predicated region
    $region46: #{tpu_custom_call.1} parent=1 // pred_check
      %p1601 = pneg %p48
    $region47: #{tpu_custom_call.1} parent=1 // pred_check_branch
      %1603 = sbr.rel (%p1601) target = $region49
    $region48: #{tpu_custom_call.1} parent=1 // pred_region
      %v1604 = vld [vmem:[%s0 + $0x38] sm:$0xff]
      %v1605 = vld [vmem:[%s4] sm:$0xff]
      %v1606 = vld [vmem:[%s4 + $0x10] sm:$0xff]
      %v1607 = vld [vmem:[%s4 + $0x18] sm:$0xff]
      %v1608 = vld [vmem:[%s4 + $0x20] sm:$0xff]
      %v1609 = vld [vmem:[%s4 + $0x30] sm:$0xff]
      %v1610 = vld [vmem:[%s4 + $0x38] sm:$0xff]
      %v1611 = vld [vmem:[%s5] sm:$0xf]
      %v1613 = vperm.slane %v1611, 0
      %v1614 = vperm.slane %v1611, 2
      %v1615 = vperm.slane %v1611, 3
      %v1620 = vsel %vm80, %v1604, 0
      %1622 = vmatpush.msra.mxu0 0.0
      %1623 = vmatpush.msra.mxu0 0.0
      %1624 = vmatpush.msra.mxu0 0.0
      %1625 = vmatpush.msra.mxu0 0.0
      %1626 = vmatpush.msra.mxu0 0.0
      %1627 = vmatpush.msra.mxu0 0.0
      %1628 = vmatpush.msra.mxu0 0.0
      %1629 = vmatpush.msra.mxu0 0.0
      %1630 = vmatpush.msra.mxu0 0.0
      %1631 = vmatpush.msra.mxu0 0.0
      %1632 = vmatpush.msra.mxu0 0.0
      %1633 = vmatpush.msra.mxu0 0.0
      %1634 = vmatpush.msra.mxu0 0.0
      %1635 = vmatpush.msra.mxu0 0.0
      %1636 = vmatpush.msra.mxu0 %v1608
      %1637 = vmatpush.msra.mxu0 %v1605
      %1638 = vmatmul.f32.gmra.mxu0 %v1620
      %v1639 = vpop.f32.mrf.mxu0
      %v1640 = vadd.f32 %v1613, %v1639
      %1641 = vdwg.mxu0
      %1642 = vmatpush.msra.mxu0 0.0
      %1643 = vmatpush.msra.mxu0 0.0
      %1644 = vmatpush.msra.mxu0 0.0
      %1645 = vmatpush.msra.mxu0 0.0
      %1646 = vmatpush.msra.mxu0 0.0
      %1647 = vmatpush.msra.mxu0 0.0
      %1648 = vmatpush.msra.mxu0 0.0
      %1649 = vmatpush.msra.mxu0 0.0
      %1650 = vmatpush.msra.mxu0 0.0
      %1651 = vmatpush.msra.mxu0 0.0
      %1652 = vmatpush.msra.mxu0 0.0
      %1653 = vmatpush.msra.mxu0 0.0
      %1654 = vmatpush.msra.mxu0 0.0
      %1655 = vmatpush.msra.mxu0 0.0
      %1656 = vmatpush.msra.mxu0 %v1609
      %1657 = vmatpush.msra.mxu0 %v1606
      %1658 = vmatmul.f32.gmra.mxu0 %v1620
      %v1659 = vpop.f32.mrf.mxu0
      %v1660 = vadd.f32 %v1614, %v1659
      %1661 = vdwg.mxu0
      %1662 = vmatpush.msra.mxu0 0.0
      %1663 = vmatpush.msra.mxu0 0.0
      %1664 = vmatpush.msra.mxu0 0.0
      %1665 = vmatpush.msra.mxu0 0.0
      %1666 = vmatpush.msra.mxu0 0.0
      %1667 = vmatpush.msra.mxu0 0.0
      %1668 = vmatpush.msra.mxu0 0.0
      %1669 = vmatpush.msra.mxu0 0.0
      %1670 = vmatpush.msra.mxu0 0.0
      %1671 = vmatpush.msra.mxu0 0.0
      %1672 = vmatpush.msra.mxu0 0.0
      %1673 = vmatpush.msra.mxu0 0.0
      %1674 = vmatpush.msra.mxu0 0.0
      %1675 = vmatpush.msra.mxu0 0.0
      %1676 = vmatpush.msra.mxu0 %v1610
      %1677 = vmatpush.msra.mxu0 %v1607
      %1678 = vmatmul.f32.gmra.mxu0 %v1620
      %v1679 = vpop.f32.mrf.mxu0
      %v1680 = vadd.f32 %v1615, %v1679
      %1681 = vdwg.mxu0
      %v1682 = vxor.u32 %v1640, 2147483648
      %v1683 = vmul.f32 %v1682, 1.442695
      %v1684 = vpow.pop %v1683
      %v1685 = vadd.f32 %v1684, 1.0
      %v1686 = vrcp.pop %v1685
      %v1687 = vmul.f32 %v1685, %v1686
      %v1688 = vsub.f32 1.0, %v1687
      %v1689 = vmul.f32 %v1686, %v1688
      %v1690 = vadd.f32 %v1686, %v1689
      %vm1691 = vweird.f32 %v1685
      %vm1692 = vweird.f32 %v1686
      %vm1693 = vmor %vm1691, %vm1692
      %v1694 = vsel %vm1693, %v1686, %v1690
      %v1695 = vand.u32 2147483647, %v1685
      %vm1696 = vcmp.eq.f32.partialorder %v1695, 8.507059e+37
      %v1697 = vand.u32 %v1685, 2147483648
      %v1698 = vor.u32 1.1754944e-38, %v1697
      %v1699 = vsel %vm1696, %v1698, %v1694
      %v1700 = vmul.f32 1.0, %v1699
      %v1701 = vxor.u32 %v1660, 2147483648
      %v1702 = vmul.f32 %v1701, 1.442695
      %v1703 = vpow.pop %v1702
      %v1704 = vadd.f32 %v1703, 1.0
      %v1705 = vrcp.pop %v1704
      %v1706 = vmul.f32 %v1704, %v1705
      %v1707 = vsub.f32 1.0, %v1706
      %v1708 = vmul.f32 %v1705, %v1707
      %v1709 = vadd.f32 %v1705, %v1708
      %vm1710 = vweird.f32 %v1704
      %vm1711 = vweird.f32 %v1705
      %vm1712 = vmor %vm1710, %vm1711
      %v1713 = vsel %vm1712, %v1705, %v1709
      %v1714 = vand.u32 2147483647, %v1704
      %vm1715 = vcmp.eq.f32.partialorder %v1714, 8.507059e+37
      %v1716 = vand.u32 %v1704, 2147483648
      %v1717 = vor.u32 1.1754944e-38, %v1716
      %v1718 = vsel %vm1715, %v1717, %v1713
      %v1719 = vmul.f32 1.0, %v1718
      %v1720 = vtanh.pop %v1680
      %v1721 = vmul.f32 %v1700, %v1720
      %v1722 = vtanh.pop %v1721
      %v1723 = vmul.f32 %v1719, %v1722
      %v1724 = vld [vmem:[%s6] sm:$0xff]
      %v1725 = vld [vmem:[%s6 + $0x8] sm:$0xff]
      %v1726 = vld [vmem:[%s6 + $0x10] sm:$0xff]
      %v1727 = vld [vmem:[%s6 + $0x18] sm:$0xff]
      %v1728 = vld [vmem:[%s6 + $0x20] sm:$0xff]
      %v1729 = vld [vmem:[%s6 + $0x28] sm:$0xff]
      %v1730 = vld [vmem:[%s6 + $0x30] sm:$0xff]
      %v1731 = vld [vmem:[%s6 + $0x38] sm:$0xff]
      %v1732 = vld [vmem:[%s6 + $0x40] sm:$0xff]
      %v1733 = vld [vmem:[%s6 + $0x48] sm:$0xff]
      %v1734 = vld [vmem:[%s6 + $0x50] sm:$0xff]
      %v1735 = vld [vmem:[%s6 + $0x58] sm:$0xff]
      %v1736 = vld [vmem:[%s6 + $0x60] sm:$0xff]
      %v1737 = vld [vmem:[%s6 + $0x68] sm:$0xff]
      %v1738 = vld [vmem:[%s6 + $0x70] sm:$0xff]
      %v1739 = vld [vmem:[%s6 + $0x78] sm:$0xff]
      %v1740 = vld [vmem:[%s7] sm:$0xff]
      %v1741 = vld [vmem:[%s7 + $0x8] sm:$0xff]
      %v1742 = vld [vmem:[%s7 + $0x10] sm:$0xff]
      %v1743 = vld [vmem:[%s7 + $0x18] sm:$0xff]
      %v1744 = vld [vmem:[%s7 + $0x20] sm:$0xff]
      %v1745 = vld [vmem:[%s7 + $0x28] sm:$0xff]
      %v1746 = vld [vmem:[%s7 + $0x30] sm:$0xff]
      %v1747 = vld [vmem:[%s7 + $0x38] sm:$0xff]
      %v1748 = vld [vmem:[%s7 + $0x40] sm:$0xff]
      %v1749 = vld [vmem:[%s7 + $0x48] sm:$0xff]
      %v1750 = vld [vmem:[%s7 + $0x50] sm:$0xff]
      %v1751 = vld [vmem:[%s7 + $0x58] sm:$0xff]
      %v1752 = vld [vmem:[%s7 + $0x60] sm:$0xff]
      %v1753 = vld [vmem:[%s7 + $0x68] sm:$0xff]
      %v1754 = vld [vmem:[%s7 + $0x70] sm:$0xff]
      %v1755 = vld [vmem:[%s7 + $0x78] sm:$0xff]
      %1756 = vmatpush.msra.mxu0 %v1755
      %1757 = vmatpush.msra.mxu0 %v1754
      %1758 = vmatpush.msra.mxu0 %v1753
      %1759 = vmatpush.msra.mxu0 %v1752
      %1760 = vmatpush.msra.mxu0 %v1751
      %1761 = vmatpush.msra.mxu0 %v1750
      %1762 = vmatpush.msra.mxu0 %v1749
      %1763 = vmatpush.msra.mxu0 %v1748
      %1764 = vmatpush.msra.mxu0 %v1747
      %1765 = vmatpush.msra.mxu0 %v1746
      %1766 = vmatpush.msra.mxu0 %v1745
      %1767 = vmatpush.msra.mxu0 %v1744
      %1768 = vmatpush.msra.mxu0 %v1743
      %1769 = vmatpush.msra.mxu0 %v1742
      %1770 = vmatpush.msra.mxu0 %v1741
      %1771 = vmatpush.msra.mxu0 %v1740
      %1772 = vmatmul.f32.gmra.mxu0 %v1723
      %v1773 = vpop.f32.mrf.mxu0
      %v1774 = vadd.f32 0.0, %v1773
      %1775 = vdwg.mxu0
      %1776 = vmatpush.msra.mxu0 %v1739
      %1777 = vmatpush.msra.mxu0 %v1738
      %1778 = vmatpush.msra.mxu0 %v1737
      %1779 = vmatpush.msra.mxu0 %v1736
      %1780 = vmatpush.msra.mxu0 %v1735
      %1781 = vmatpush.msra.mxu0 %v1734
      %1782 = vmatpush.msra.mxu0 %v1733
      %1783 = vmatpush.msra.mxu0 %v1732
      %1784 = vmatpush.msra.mxu0 %v1731
      %1785 = vmatpush.msra.mxu0 %v1730
      %1786 = vmatpush.msra.mxu0 %v1729
      %1787 = vmatpush.msra.mxu0 %v1728
      %1788 = vmatpush.msra.mxu0 %v1727
      %1789 = vmatpush.msra.mxu0 %v1726
      %1790 = vmatpush.msra.mxu0 %v1725
      %1791 = vmatpush.msra.mxu0 %v1724
      %1792 = vmatmul.f32.gmra.mxu0 %v1598
      %v1793 = vpop.f32.mrf.mxu0
      %v1794 = vadd.f32 %v1774, %v1793
      %1795 = vdwg.mxu0
      %v1796 = vld [vmem:[%s8] sm:$0x1]
      %v1798 = vperm.slane %v1796, 0
      %v1800 = vadd.f32 %v1794, %v1798
      %vm1801 = vcmask 31744
      %1802 = vst.msk [vmem:[%s9] sm:$0xff] %vm1801, %v1800
    $region49: #{tpu_custom_call.1} parent=1 // pred_fallthru
      _
    // Predicated region
    $region50: #{tpu_custom_call.1} parent=1 // pred_check
      _
    $region51: #{tpu_custom_call.1} parent=1 // pred_check_branch
      %1804 = sbr.rel (0) target = $region53
    $region52: #{tpu_custom_call.1} parent=1 // pred_region
      _
    $region53: #{tpu_custom_call.1} parent=1 // pred_fallthru
      _
    // Predicated region
    $region54: #{tpu_custom_call.1} parent=1 // pred_check
      _
    $region55: #{tpu_custom_call.1} parent=1 // pred_check_branch
      %1806 = sbr.rel (0) target = $region57
    $region56: #{tpu_custom_call.1} parent=1 // pred_region
      _
    $region57: #{tpu_custom_call.1} parent=1 // pred_fallthru
      _
    %1807 = vsyncpa [#allocation6], 1

</llo_original>
